<compile_context>
chip_gen: v6e
topology: v6e:2x2x1
jax: 0.10.0
libtpu: 0.0.40
codegen_flags: <defaults>
</compile_context>

<pallas_src>
import functools

import jax
import jax.numpy as jnp
from jax.experimental import pallas as pl
from jax.experimental.pallas import tpu as pltpu


def _round_up(n, m):
    return ((n + m - 1) // m) * m


def _layer_norm(h, gamma, beta, true_feat, pad_feat, eps=1e-5):
    """LayerNorm over the last dim using statistics over the TRUE feature count.

    Padded lanes (index >= true_feat) are masked out of mean/variance; with
    zero-padded weights/biases they are already zero, the mask keeps them out
    of the variance regardless.
    """
    inv_n = 1.0 / float(true_feat)
    mask = None
    if pad_feat != true_feat:
        lane = jax.lax.broadcasted_iota(jnp.int32, h.shape, 1)
        mask = (lane < true_feat).astype(h.dtype)
        h = h * mask
    mu = jnp.sum(h, axis=-1, keepdims=True) * inv_n
    diff = h - mu
    if mask is not None:
        diff = diff * mask
    var = jnp.sum(diff * diff, axis=-1, keepdims=True) * inv_n
    return diff * jax.lax.rsqrt(var + eps) * gamma + beta


def actor_kernel(x_ref, w1_ref, b1_ref, g1_ref, be1_ref,
                 w2_ref, b2_ref, w3_ref, b3_ref, out_ref,
                 *, true_lin2, pad_lin2, out_dim):
    # x / w1 / w2 arrive as bf16 (MXU operands); all element-wise math is f32.
    x = x_ref[...]                                            # (TILE_B, lin1_pad) bf16

    # linear1 -> layer_norm_1 -> relu
    h1 = jnp.dot(x, w1_ref[...], preferred_element_type=jnp.float32) + b1_ref[...]
    h1 = _layer_norm(h1, g1_ref[...], be1_ref[...], true_lin2, pad_lin2)
    h1 = jnp.maximum(h1, 0.0)

    # linear2 -> layer_norm_1 AGAIN (same gamma/beta; matches the PyTorch
    # forward, which never touches layer_norm_2 — do NOT "fix" this) -> relu
    h2 = jnp.dot(h1.astype(jnp.bfloat16), w2_ref[...],
                 preferred_element_type=jnp.float32) + b2_ref[...]
    h2 = _layer_norm(h2, g1_ref[...], be1_ref[...], true_lin2, pad_lin2)
    h2 = jnp.maximum(h2, 0.0)

    # linear3 -> tanh
    if out_dim == 1:
        # N=1 matmul is MXU-hostile; lane reduction rides the VPU/XLU instead.
        w3_row = w3_ref[...].astype(jnp.float32)              # (1, lin2_pad)
        a = jnp.sum(h2 * w3_row, axis=-1, keepdims=True) + b3_ref[...]
    else:
        a = jnp.dot(h2.astype(jnp.bfloat16), w3_ref[...],
                    preferred_element_type=jnp.float32) + b3_ref[...]
    out_ref[...] = jnp.tanh(a).astype(out_ref.dtype)


def actor_forward(x, params, tile_b=256):
    """Forward pass. x: (B, lin1_dim) f32; params as produced by init_params."""
    w1, b1, g1, be1, w2, b2, w3, b3 = params
    B, lin1 = x.shape
    lin2 = w1.shape[1]
    out_dim = w3.shape[1]

    # 128-align feature dims so MXU tiles and vector memory ops are unmasked.
    lin1_p = _round_up(lin1, 128)
    lin2_p = _round_up(lin2, 128)

    # Batch tiling: largest 8-aligned tile <= tile_b; pad B up to a multiple.
    tb = min(tile_b, _round_up(B, 8))
    b_p = _round_up(B, tb)

    f32, bf16 = jnp.float32, jnp.bfloat16
    xp = jnp.pad(x, ((0, b_p - B), (0, lin1_p - lin1))).astype(bf16)
    w1p = jnp.pad(w1, ((0, lin1_p - lin1), (0, lin2_p - lin2))).astype(bf16)
    w2p = jnp.pad(w2, ((0, lin2_p - lin2), (0, lin2_p - lin2))).astype(bf16)
    b1p = jnp.pad(b1, ((0, 0), (0, lin2_p - lin2))).astype(f32)
    b2p = jnp.pad(b2, ((0, 0), (0, lin2_p - lin2))).astype(f32)
    g1p = jnp.pad(g1, ((0, 0), (0, lin2_p - lin2))).astype(f32)
    be1p = jnp.pad(be1, ((0, 0), (0, lin2_p - lin2))).astype(f32)

    if out_dim == 1:
        w3k = jnp.pad(w3.T, ((0, 0), (0, lin2_p - lin2))).astype(f32)   # (1, lin2_p)
        b3k = b3.astype(f32)                                            # (1, 1)
        w3_spec = pl.BlockSpec((1, lin2_p), lambda i: (0, 0))
        b3_spec = pl.BlockSpec((1, 1), lambda i: (0, 0))
    else:
        w3k = jnp.pad(w3, ((0, lin2_p - lin2), (0, 0))).astype(bf16)    # (lin2_p, out)
        b3k = b3.astype(f32)                                            # (1, out)
        w3_spec = pl.BlockSpec((lin2_p, out_dim), lambda i: (0, 0))
        b3_spec = pl.BlockSpec((1, out_dim), lambda i: (0, 0))

    def resident(shape):
        # Same block index every grid step -> stays resident in VMEM.
        return pl.BlockSpec(shape, lambda i: (0, 0))

    kernel = functools.partial(actor_kernel, true_lin2=lin2, pad_lin2=lin2_p,
                               out_dim=out_dim)

    flops = 2 * b_p * (lin1_p * lin2_p + lin2_p * lin2_p + lin2_p * out_dim)
    bytes_accessed = (xp.size * 2 + w1p.size * 2 + w2p.size * 2
                      + int(w3k.size) * int(w3k.dtype.itemsize)
                      + (b1p.size + b2p.size + g1p.size + be1p.size + b3k.size) * 4
                      + b_p * out_dim * 4)

    out = pl.pallas_call(
        kernel,
        out_shape=jax.ShapeDtypeStruct((b_p, out_dim), jnp.float32),
        grid=(b_p // tb,),
        in_specs=[
            pl.BlockSpec((tb, lin1_p), lambda i: (i, 0)),   # x: tiled over batch
            resident((lin1_p, lin2_p)),                     # w1
            resident((1, lin2_p)),                          # b1
            resident((1, lin2_p)),                          # layernorm_1 gamma
            resident((1, lin2_p)),                          # layernorm_1 beta
            resident((lin2_p, lin2_p)),                     # w2
            resident((1, lin2_p)),                          # b2
            w3_spec,                                        # w3
            b3_spec,                                        # b3
        ],
        out_specs=pl.BlockSpec((tb, out_dim), lambda i: (i, 0)),
        compiler_params=pltpu.CompilerParams(
            dimension_semantics=("parallel",)),             # v7x: shard batch over 2 TCs
        cost_estimate=pl.CostEstimate(
            flops=flops,
            transcendentals=b_p * (out_dim + 2),
            bytes_accessed=bytes_accessed),
    )(xp, w1p, b1p, g1p, be1p, w2p, b2p, w3k, b3k)
    return out[:B]


def init_params(key, lin1_dim, lin2_dim, out_dim):
    """Deterministic init mimicking PyTorch defaults (my_init_hyp=0).

    NOTE: weights are stored (in_features, out_features); importing a PyTorch
    checkpoint (which stores (out, in)) requires a transpose.
    """
    ks = jax.random.split(key, 6)

    def linear_init(kw, kb, fan_in, fan_out):
        bound = 1.0 / jnp.sqrt(fan_in)
        w = jax.random.uniform(kw, (fan_in, fan_out), jnp.float32, -bound, bound)
        b = jax.random.uniform(kb, (1, fan_out), jnp.float32, -bound, bound)
        return w, b

    w1, b1 = linear_init(ks[0], ks[1], lin1_dim, lin2_dim)
    w2, b2 = linear_init(ks[2], ks[3], lin2_dim, lin2_dim)
    w3, b3 = linear_init(ks[4], ks[5], lin2_dim, out_dim)
    # layer_norm_1 params (layer_norm_2 exists in the module but is unused).
    g1 = jnp.ones((1, lin2_dim), jnp.float32)
    be1 = jnp.zeros((1, lin2_dim), jnp.float32)
    return (w1, b1, g1, be1, w2, b2, w3, b3)


def _reference(x, params):
    """Pure-JAX reference with matching bf16 MXU operands / f32 accumulation."""
    w1, b1, g1, be1, w2, b2, w3, b3 = params
    bf16 = jnp.bfloat16

    def ln(h, gamma, beta, eps=1e-5):
        mu = jnp.mean(h, axis=-1, keepdims=True)
        var = jnp.mean((h - mu) ** 2, axis=-1, keepdims=True)
        return (h - mu) * jax.lax.rsqrt(var + eps) * gamma + beta

    h1 = jnp.dot(x.astype(bf16), w1.astype(bf16),
                 preferred_element_type=jnp.float32) + b1
    h1 = jnp.maximum(ln(h1, g1, be1), 0.0)
    h2 = jnp.dot(h1.astype(bf16), w2.astype(bf16),
                 preferred_element_type=jnp.float32) + b2
    h2 = jnp.maximum(ln(h2, g1, be1), 0.0)
    return jnp.tanh(jnp.dot(h2, w3) + b3)


if __name__ == "__main__":
    # Module-default feature widths (400 / 300 / 1) with a small batch; this
    # exercises the 128-padding + masked-layernorm path and the batch grid.
    B, lin1_dim, lin2_dim, out_dim = 16, 400, 300, 1

    key = jax.random.PRNGKey(0)
    kx, kp = jax.random.split(key)
    x = jax.random.normal(kx, (B, lin1_dim), jnp.float32)
    params = init_params(kp, lin1_dim, lin2_dim, out_dim)

    out = actor_forward(x, params)
    jax.block_until_ready(out)

    ref = _reference(x, params)
    assert out.shape == (B, out_dim)
    assert bool(jnp.all(jnp.isfinite(out)))
    assert bool(jnp.all(jnp.abs(out) <= 1.0))          # tanh range
    assert bool(jnp.allclose(out, ref, atol=1e-2, rtol=1e-2))
    print("KERNEL_OK")
</pallas_src>

<mosaic_0001>
module attributes {stable_mosaic.version = 11 : i64} {
  func.func @actor_kernel(%arg0: i32, %arg1: memref<16x512xbf16, #tpu.memory_space<vmem>>, %arg2: memref<512x384xbf16, #tpu.memory_space<vmem>>, %arg3: memref<1x384xf32, #tpu.memory_space<vmem>>, %arg4: memref<1x384xf32, #tpu.memory_space<vmem>>, %arg5: memref<1x384xf32, #tpu.memory_space<vmem>>, %arg6: memref<384x384xbf16, #tpu.memory_space<vmem>>, %arg7: memref<1x384xf32, #tpu.memory_space<vmem>>, %arg8: memref<1x384xf32, #tpu.memory_space<vmem>>, %arg9: memref<1x1xf32, #tpu.memory_space<vmem>>, %arg10: memref<16x1xf32, #tpu.memory_space<vmem>>) attributes {dimension_semantics = [#tpu.dimension_semantics<parallel>], iteration_bounds = array<i64: 1>, scalar_prefetch = 0 : i64, scratch_operands = 0 : i64, tpu.core_type = #tpu.core_type<tc>, window_params = [{transform_indices = @transform_0, window_bounds = array<i64: 16, 512>}, {pipeline_mode = #tpu.pipeline_mode<synchronous>, transform_indices = @transform_1, window_bounds = array<i64: 512, 384>}, {pipeline_mode = #tpu.pipeline_mode<synchronous>, transform_indices = @transform_2, window_bounds = array<i64: 1, 384>}, {pipeline_mode = #tpu.pipeline_mode<synchronous>, transform_indices = @transform_3, window_bounds = array<i64: 1, 384>}, {pipeline_mode = #tpu.pipeline_mode<synchronous>, transform_indices = @transform_4, window_bounds = array<i64: 1, 384>}, {pipeline_mode = #tpu.pipeline_mode<synchronous>, transform_indices = @transform_5, window_bounds = array<i64: 384, 384>}, {pipeline_mode = #tpu.pipeline_mode<synchronous>, transform_indices = @transform_6, window_bounds = array<i64: 1, 384>}, {pipeline_mode = #tpu.pipeline_mode<synchronous>, transform_indices = @transform_7, window_bounds = array<i64: 1, 384>}, {pipeline_mode = #tpu.pipeline_mode<synchronous>, transform_indices = @transform_8, window_bounds = array<i64: 1, 1>}, {transform_indices = @transform_9, window_bounds = array<i64: 16, 1>}]} {
    %c0 = arith.constant 0 : index
    %c0_0 = arith.constant 0 : index
    %0 = vector.load %arg1[%c0, %c0_0] : memref<16x512xbf16, #tpu.memory_space<vmem>>, vector<16x512xbf16>
    %c0_1 = arith.constant 0 : index
    %c0_2 = arith.constant 0 : index
    %1 = vector.load %arg2[%c0_1, %c0_2] : memref<512x384xbf16, #tpu.memory_space<vmem>>, vector<512x384xbf16>
    %cst = arith.constant dense<0.000000e+00> : vector<16x384xf32>
    %2 = tpu.matmul %0, %1, %cst {dimension_numbers = #tpu.dot_dimension_numbers<[1], [0], [0], [1], [0, 0, 1, 1], [], []>} : vector<16x512xbf16>, vector<512x384xbf16>, vector<16x384xf32> -> vector<16x384xf32>
    %c0_3 = arith.constant 0 : index
    %c0_4 = arith.constant 0 : index
    %3 = vector.load %arg3[%c0_3, %c0_4] : memref<1x384xf32, #tpu.memory_space<vmem>>, vector<1x384xf32>
    %4 = vector.broadcast %3 : vector<1x384xf32> to vector<16x384xf32>
    %5 = arith.addf %2, %4 : vector<16x384xf32>
    %c0_5 = arith.constant 0 : index
    %c0_6 = arith.constant 0 : index
    %6 = vector.load %arg4[%c0_5, %c0_6] : memref<1x384xf32, #tpu.memory_space<vmem>>, vector<1x384xf32>
    %c0_7 = arith.constant 0 : index
    %c0_8 = arith.constant 0 : index
    %7 = vector.load %arg5[%c0_7, %c0_8] : memref<1x384xf32, #tpu.memory_space<vmem>>, vector<1x384xf32>
    %8 = tpu.iota {dimensions = array<i32: 1>} : vector<16x384xi32>
    %c300_i32 = arith.constant 300 : i32
    %9 = vector.broadcast %c300_i32 : i32 to vector<16x384xi32>
    %10 = arith.cmpi slt, %8, %9 : vector<16x384xi32>
    %11 = arith.extui %10 : vector<16x384xi1> to vector<16x384xi32>
    %12 = arith.sitofp %11 : vector<16x384xi32> to vector<16x384xf32>
    %13 = arith.mulf %5, %12 : vector<16x384xf32>
    %cst_9 = arith.constant dense<0.000000e+00> : vector<16xf32>
    %14 = vector.multi_reduction <add>, %13, %cst_9 [1] : vector<16x384xf32> to vector<16xf32>
    %15 = vector.shape_cast %14 : vector<16xf32> to vector<16x1xf32>
    %cst_10 = arith.constant 0.00333333341 : f32
    %16 = vector.broadcast %cst_10 : f32 to vector<16x1xf32>
    %17 = arith.mulf %15, %16 : vector<16x1xf32>
    %18 = vector.broadcast %17 : vector<16x1xf32> to vector<16x384xf32>
    %19 = arith.subf %13, %18 : vector<16x384xf32>
    %20 = arith.mulf %19, %12 : vector<16x384xf32>
    %21 = arith.mulf %20, %20 : vector<16x384xf32>
    %cst_11 = arith.constant dense<0.000000e+00> : vector<16xf32>
    %22 = vector.multi_reduction <add>, %21, %cst_11 [1] : vector<16x384xf32> to vector<16xf32>
    %23 = vector.shape_cast %22 : vector<16xf32> to vector<16x1xf32>
    %cst_12 = arith.constant 0.00333333341 : f32
    %24 = vector.broadcast %cst_12 : f32 to vector<16x1xf32>
    %25 = arith.mulf %23, %24 : vector<16x1xf32>
    %cst_13 = arith.constant 9.99999974E-6 : f32
    %26 = vector.broadcast %cst_13 : f32 to vector<16x1xf32>
    %27 = arith.addf %25, %26 : vector<16x1xf32>
    %28 = math.rsqrt %27 : vector<16x1xf32>
    %29 = vector.broadcast %28 : vector<16x1xf32> to vector<16x384xf32>
    %30 = arith.mulf %20, %29 : vector<16x384xf32>
    %31 = vector.broadcast %6 : vector<1x384xf32> to vector<16x384xf32>
    %32 = arith.mulf %30, %31 : vector<16x384xf32>
    %33 = vector.broadcast %7 : vector<1x384xf32> to vector<16x384xf32>
    %34 = arith.addf %32, %33 : vector<16x384xf32>
    %cst_14 = arith.constant 0.000000e+00 : f32
    %35 = vector.broadcast %cst_14 : f32 to vector<16x384xf32>
    %36 = arith.maximumf %34, %35 : vector<16x384xf32>
    %37 = arith.truncf %36 : vector<16x384xf32> to vector<16x384xbf16>
    %c0_15 = arith.constant 0 : index
    %c0_16 = arith.constant 0 : index
    %38 = vector.load %arg6[%c0_15, %c0_16] : memref<384x384xbf16, #tpu.memory_space<vmem>>, vector<384x384xbf16>
    %cst_17 = arith.constant dense<0.000000e+00> : vector<16x384xf32>
    %39 = tpu.matmul %37, %38, %cst_17 {dimension_numbers = #tpu.dot_dimension_numbers<[1], [0], [0], [1], [0, 0, 1, 1], [], []>} : vector<16x384xbf16>, vector<384x384xbf16>, vector<16x384xf32> -> vector<16x384xf32>
    %c0_18 = arith.constant 0 : index
    %c0_19 = arith.constant 0 : index
    %40 = vector.load %arg7[%c0_18, %c0_19] : memref<1x384xf32, #tpu.memory_space<vmem>>, vector<1x384xf32>
    %41 = vector.broadcast %40 : vector<1x384xf32> to vector<16x384xf32>
    %42 = arith.addf %39, %41 : vector<16x384xf32>
    %c0_20 = arith.constant 0 : index
    %c0_21 = arith.constant 0 : index
    %43 = vector.load %arg4[%c0_20, %c0_21] : memref<1x384xf32, #tpu.memory_space<vmem>>, vector<1x384xf32>
    %c0_22 = arith.constant 0 : index
    %c0_23 = arith.constant 0 : index
    %44 = vector.load %arg5[%c0_22, %c0_23] : memref<1x384xf32, #tpu.memory_space<vmem>>, vector<1x384xf32>
    %45 = tpu.iota {dimensions = array<i32: 1>} : vector<16x384xi32>
    %c300_i32_24 = arith.constant 300 : i32
    %46 = vector.broadcast %c300_i32_24 : i32 to vector<16x384xi32>
    %47 = arith.cmpi slt, %45, %46 : vector<16x384xi32>
    %48 = arith.extui %47 : vector<16x384xi1> to vector<16x384xi32>
    %49 = arith.sitofp %48 : vector<16x384xi32> to vector<16x384xf32>
    %50 = arith.mulf %42, %49 : vector<16x384xf32>
    %cst_25 = arith.constant dense<0.000000e+00> : vector<16xf32>
    %51 = vector.multi_reduction <add>, %50, %cst_25 [1] : vector<16x384xf32> to vector<16xf32>
    %52 = vector.shape_cast %51 : vector<16xf32> to vector<16x1xf32>
    %cst_26 = arith.constant 0.00333333341 : f32
    %53 = vector.broadcast %cst_26 : f32 to vector<16x1xf32>
    %54 = arith.mulf %52, %53 : vector<16x1xf32>
    %55 = vector.broadcast %54 : vector<16x1xf32> to vector<16x384xf32>
    %56 = arith.subf %50, %55 : vector<16x384xf32>
    %57 = arith.mulf %56, %49 : vector<16x384xf32>
    %58 = arith.mulf %57, %57 : vector<16x384xf32>
    %cst_27 = arith.constant dense<0.000000e+00> : vector<16xf32>
    %59 = vector.multi_reduction <add>, %58, %cst_27 [1] : vector<16x384xf32> to vector<16xf32>
    %60 = vector.shape_cast %59 : vector<16xf32> to vector<16x1xf32>
    %cst_28 = arith.constant 0.00333333341 : f32
    %61 = vector.broadcast %cst_28 : f32 to vector<16x1xf32>
    %62 = arith.mulf %60, %61 : vector<16x1xf32>
    %cst_29 = arith.constant 9.99999974E-6 : f32
    %63 = vector.broadcast %cst_29 : f32 to vector<16x1xf32>
    %64 = arith.addf %62, %63 : vector<16x1xf32>
    %65 = math.rsqrt %64 : vector<16x1xf32>
    %66 = vector.broadcast %65 : vector<16x1xf32> to vector<16x384xf32>
    %67 = arith.mulf %57, %66 : vector<16x384xf32>
    %68 = vector.broadcast %43 : vector<1x384xf32> to vector<16x384xf32>
    %69 = arith.mulf %67, %68 : vector<16x384xf32>
    %70 = vector.broadcast %44 : vector<1x384xf32> to vector<16x384xf32>
    %71 = arith.addf %69, %70 : vector<16x384xf32>
    %cst_30 = arith.constant 0.000000e+00 : f32
    %72 = vector.broadcast %cst_30 : f32 to vector<16x384xf32>
    %73 = arith.maximumf %71, %72 : vector<16x384xf32>
    %c0_31 = arith.constant 0 : index
    %c0_32 = arith.constant 0 : index
    %74 = vector.load %arg8[%c0_31, %c0_32] : memref<1x384xf32, #tpu.memory_space<vmem>>, vector<1x384xf32>
    %75 = vector.broadcast %74 : vector<1x384xf32> to vector<16x384xf32>
    %76 = arith.mulf %73, %75 : vector<16x384xf32>
    %cst_33 = arith.constant dense<0.000000e+00> : vector<16xf32>
    %77 = vector.multi_reduction <add>, %76, %cst_33 [1] : vector<16x384xf32> to vector<16xf32>
    %78 = vector.shape_cast %77 : vector<16xf32> to vector<16x1xf32>
    %c0_34 = arith.constant 0 : index
    %c0_35 = arith.constant 0 : index
    %79 = vector.load %arg9[%c0_34, %c0_35] : memref<1x1xf32, #tpu.memory_space<vmem>>, vector<1x1xf32>
    %80 = vector.broadcast %79 : vector<1x1xf32> to vector<16x1xf32>
    %81 = arith.addf %78, %80 : vector<16x1xf32>
    %82 = math.tanh %81 : vector<16x1xf32>
    %c0_36 = arith.constant 0 : index
    %c0_37 = arith.constant 0 : index
    %83 = vector.load %arg10[%c0_36, %c0_37] : memref<16x1xf32, #tpu.memory_space<vmem>>, vector<16x1xf32>
    tpu.vector_store %arg10[%c0_36, %c0_37], %82 {strides = array<i32>} : memref<16x1xf32, #tpu.memory_space<vmem>>, vector<16x1xf32>,
    return
  }
  func.func @transform_0(%arg0: i32) -> (i32, i32) {
    %c0_i32 = arith.constant 0 : i32
    %c0_i32_0 = arith.constant 0 : i32
    return %arg0, %c0_i32 : i32, i32
  }
  func.func @transform_1(%arg0: i32) -> (i32, i32) {
    %c0_i32 = arith.constant 0 : i32
    %c0_i32_0 = arith.constant 0 : i32
    %c0_i32_1 = arith.constant 0 : i32
    return %c0_i32, %c0_i32_0 : i32, i32
  }
  func.func @transform_2(%arg0: i32) -> (i32, i32) {
    %c0_i32 = arith.constant 0 : i32
    %c0_i32_0 = arith.constant 0 : i32
    %c0_i32_1 = arith.constant 0 : i32
    return %c0_i32, %c0_i32_0 : i32, i32
  }
  func.func @transform_3(%arg0: i32) -> (i32, i32) {
    %c0_i32 = arith.constant 0 : i32
    %c0_i32_0 = arith.constant 0 : i32
    %c0_i32_1 = arith.constant 0 : i32
    return %c0_i32, %c0_i32_0 : i32, i32
  }
  func.func @transform_4(%arg0: i32) -> (i32, i32) {
    %c0_i32 = arith.constant 0 : i32
    %c0_i32_0 = arith.constant 0 : i32
    %c0_i32_1 = arith.constant 0 : i32
    return %c0_i32, %c0_i32_0 : i32, i32
  }
  func.func @transform_5(%arg0: i32) -> (i32, i32) {
    %c0_i32 = arith.constant 0 : i32
    %c0_i32_0 = arith.constant 0 : i32
    %c0_i32_1 = arith.constant 0 : i32
    return %c0_i32, %c0_i32_0 : i32, i32
  }
  func.func @transform_6(%arg0: i32) -> (i32, i32) {
    %c0_i32 = arith.constant 0 : i32
    %c0_i32_0 = arith.constant 0 : i32
    %c0_i32_1 = arith.constant 0 : i32
    return %c0_i32, %c0_i32_0 : i32, i32
  }
  func.func @transform_7(%arg0: i32) -> (i32, i32) {
    %c0_i32 = arith.constant 0 : i32
    %c0_i32_0 = arith.constant 0 : i32
    %c0_i32_1 = arith.constant 0 : i32
    return %c0_i32, %c0_i32_0 : i32, i32
  }
  func.func @transform_8(%arg0: i32) -> (i32, i32) {
    %c0_i32 = arith.constant 0 : i32
    %c0_i32_0 = arith.constant 0 : i32
    %c0_i32_1 = arith.constant 0 : i32
    return %c0_i32, %c0_i32_0 : i32, i32
  }
  func.func @transform_9(%arg0: i32) -> (i32, i32) {
    %c0_i32 = arith.constant 0 : i32
    %c0_i32_0 = arith.constant 0 : i32
    return %arg0, %c0_i32 : i32, i32
  }
}

</mosaic_0001>

<llo_original>
// kernel: tpu_custom_call.1
$region0: #{tpu_custom_call.1}
  #allocation0 [shape = 'u32[]', space=smem, size = 0x4, offset = 0x4, fixed_abs, tag = 'smem constant byte address 0x4 - core index']
  #allocation1 [shape = 'u32[144,128]{1,0:T(1,128)}', space=vmem, size = 0x12000, scoped, tag = 'internal scratch']
  #allocation2 [shape = 'f32[1,1]{1,0:T(1,128)S(1)}', space=vmem, size = 0x200, scoped, tag = 'scoped memory for tpu_custom_call.1']
  %s0 = inlined_call_operand.hbm [shape: bf16[16,512], index: 0, kind: input, shape index: {}]
  %s1 = inlined_call_operand.hbm [shape: bf16[512,384], index: 1, kind: input, shape index: {}]
  %s2 = inlined_call_operand.vmem [shape: f32[1,384], index: 2, kind: input, shape index: {}]
  %s3 = inlined_call_operand.vmem [shape: f32[1,384], index: 3, kind: input, shape index: {}]
  %s4 = inlined_call_operand.vmem [shape: f32[1,384], index: 4, kind: input, shape index: {}]
  %s5 = inlined_call_operand.hbm [shape: bf16[384,384], index: 5, kind: input, shape index: {}]
  %s6 = inlined_call_operand.vmem [shape: f32[1,384], index: 6, kind: input, shape index: {}]
  %s7 = inlined_call_operand.hbm [shape: f32[1,384], index: 7, kind: input, shape index: {}]
  %s8 = inlined_call_operand.<no memory space> [shape: f32[1,1], index: 8, kind: input, shape index: {}]
  %s9 = inlined_call_operand.vmem [shape: f32[16,1], index: 9, kind: output, shape index: {}]
  %s10 = sld [smem:[#allocation0]]
  $region62: #{tpu_custom_call.1} parent=0
    _
  %s12 = ssub.s32 1, %s10
  %s13 = scalar_select 0, %s12, %s10
  %v14 = vstv %s8
  %15 = vst [vmem:[#allocation2] sm:$0x1] %v14
  $region1: #{tpu_custom_call.1} parent=0
    #allocation3 [shape = 'u8[16384]{0}', space=vmem, size = 0x4000, scoped, tag = 'input window, operand 0, single buffered']
    #allocation4 [shape = 's32[1]{0}', space=sflag, size = 0x4, scoped, tag = 'scoped memory for tpu_custom_call.1']
    #allocation5 [shape = 'u8[393216]{0}', space=vmem, size = 0x60000, scoped, tag = 'input window, operand 1, single buffered']
    #allocation6 [shape = 's32[1]{0}', space=sflag, size = 0x4, scoped, tag = 'scoped memory for tpu_custom_call.1']
    #allocation7 [shape = 'u8[294912]{0}', space=vmem, size = 0x48000, scoped, tag = 'input window, operand 5, single buffered']
    #allocation8 [shape = 'u8[1536]{0}', space=vmem, size = 0x800, scoped, tag = 'input window, operand 7, single buffered']
    #allocation9 [shape = 's32[1]{0}', space=sflag, size = 0x4, scoped, tag = 'scoped memory for tpu_custom_call.1']
    %16 = vsyncpa [#allocation4], 0
    %17 = vsyncpa [#allocation6], 0
    %18 = vsyncpa [#allocation9], 0
    // Predicated region
    $region2: #{tpu_custom_call.1} parent=1 // pred_check
      _
    $region3: #{tpu_custom_call.1} parent=1 // pred_check_branch
      %20 = sbr.rel (0) target = $region5
    $region4: #{tpu_custom_call.1} parent=1 // pred_region
      %s22 = ssub.s32 512, 512
      %23 = vsyncadd [#allocation4], %s22
      %s24 = sshll.u32 [#allocation3], 4
      %s25 = int_to_ptr.vmem [resolvable:$true] %s24
      %30 = dma.hbm_to_vmem [thread:$0]  %s0, 512, %s25, [#allocation4], 256, 256, 16
    $region5: #{tpu_custom_call.1} parent=1 // pred_fallthru
      _
    // Predicated region
    $region6: #{tpu_custom_call.1} parent=1 // pred_check
      _
    $region7: #{tpu_custom_call.1} parent=1 // pred_check_branch
      %32 = sbr.rel (0) target = $region9
    $region8: #{tpu_custom_call.1} parent=1 // pred_region
      %s34 = ssub.s32 12288, 12288
      %35 = vsyncadd [#allocation6], %s34
      %s36 = sshll.u32 [#allocation5], 4
      %s37 = int_to_ptr.vmem [resolvable:$true] %s36
      %42 = dma.hbm_to_vmem [thread:$0]  %s1, 12288, %s37, [#allocation6], 192, 192, 12
    $region9: #{tpu_custom_call.1} parent=1 // pred_fallthru
      _
    // Predicated region
    $region10: #{tpu_custom_call.1} parent=1 // pred_check
      _
    $region11: #{tpu_custom_call.1} parent=1 // pred_check_branch
      %44 = sbr.rel (0) target = $region13
    $region12: #{tpu_custom_call.1} parent=1 // pred_region
      _
    $region13: #{tpu_custom_call.1} parent=1 // pred_fallthru
      _
    // Predicated region
    $region14: #{tpu_custom_call.1} parent=1 // pred_check
      _
    $region15: #{tpu_custom_call.1} parent=1 // pred_check_branch
      %46 = sbr.rel (0) target = $region17
    $region16: #{tpu_custom_call.1} parent=1 // pred_region
      _
    $region17: #{tpu_custom_call.1} parent=1 // pred_fallthru
      _
    // Predicated region
    $region18: #{tpu_custom_call.1} parent=1 // pred_check
      _
    $region19: #{tpu_custom_call.1} parent=1 // pred_check_branch
      %48 = sbr.rel (0) target = $region21
    $region20: #{tpu_custom_call.1} parent=1 // pred_region
      _
    $region21: #{tpu_custom_call.1} parent=1 // pred_fallthru
      _
    // Predicated region
    $region22: #{tpu_custom_call.1} parent=1 // pred_check
      _
    $region23: #{tpu_custom_call.1} parent=1 // pred_check_branch
      %50 = sbr.rel (0) target = $region25
    $region24: #{tpu_custom_call.1} parent=1 // pred_region
      %s52 = ssub.s32 9216, 9216
      %53 = vsyncadd [#allocation6], %s52
      %s54 = sshll.u32 [#allocation7], 4
      %s55 = int_to_ptr.vmem [resolvable:$true] %s54
      %60 = dma.hbm_to_vmem [thread:$0]  %s5, 9216, %s55, [#allocation6], 192, 192, 12
    $region25: #{tpu_custom_call.1} parent=1 // pred_fallthru
      _
    // Predicated region
    $region26: #{tpu_custom_call.1} parent=1 // pred_check
      _
    $region27: #{tpu_custom_call.1} parent=1 // pred_check_branch
      %62 = sbr.rel (0) target = $region29
    $region28: #{tpu_custom_call.1} parent=1 // pred_region
      _
    $region29: #{tpu_custom_call.1} parent=1 // pred_fallthru
      _
    // Predicated region
    $region30: #{tpu_custom_call.1} parent=1 // pred_check
      _
    $region31: #{tpu_custom_call.1} parent=1 // pred_check_branch
      %64 = sbr.rel (0) target = $region33
    $region32: #{tpu_custom_call.1} parent=1 // pred_region
      %s66 = ssub.s32 48, 48
      %67 = vsyncadd [#allocation9], %s66
      %s69 = sshll.u32 [#allocation8], 4
      %s70 = int_to_ptr.vmem [resolvable:$true] %s69
      %72 = dma.hbm_to_vmem [thread:$0]  %s7, 48, %s70, [#allocation9]
    $region33: #{tpu_custom_call.1} parent=1 // pred_fallthru
      _
    // Predicated region
    $region34: #{tpu_custom_call.1} parent=1 // pred_check
      _
    $region35: #{tpu_custom_call.1} parent=1 // pred_check_branch
      %74 = sbr.rel (0) target = $region37
    $region36: #{tpu_custom_call.1} parent=1 // pred_region
      _
    $region37: #{tpu_custom_call.1} parent=1 // pred_fallthru
      _
    // Predicated region
    $region38: #{tpu_custom_call.1} parent=1 // pred_check
      _
    $region39: #{tpu_custom_call.1} parent=1 // pred_check_branch
      %76 = sbr.rel (0) target = $region41
    $region40: #{tpu_custom_call.1} parent=1 // pred_region
      %77 = dma.done [#allocation4], 512
    $region41: #{tpu_custom_call.1} parent=1 // pred_fallthru
      _
    // Predicated region
    $region42: #{tpu_custom_call.1} parent=1 // pred_check
      _
    $region43: #{tpu_custom_call.1} parent=1 // pred_check_branch
      %79 = sbr.rel (0) target = $region45
    $region44: #{tpu_custom_call.1} parent=1 // pred_region
      %80 = dma.done [#allocation6], 12288
    $region45: #{tpu_custom_call.1} parent=1 // pred_fallthru
      _
    // Predicated region
    $region46: #{tpu_custom_call.1} parent=1 // pred_check
      _
    $region47: #{tpu_custom_call.1} parent=1 // pred_check_branch
      %82 = sbr.rel (0) target = $region49
    $region48: #{tpu_custom_call.1} parent=1 // pred_region
      %83 = dma.done [#allocation6], 9216
    $region49: #{tpu_custom_call.1} parent=1 // pred_fallthru
      _
    // Predicated region
    $region50: #{tpu_custom_call.1} parent=1 // pred_check
      _
    $region51: #{tpu_custom_call.1} parent=1 // pred_check_branch
      %85 = sbr.rel (0) target = $region53
    $region52: #{tpu_custom_call.1} parent=1 // pred_region
      %86 = dma.done [#allocation9], 48
    $region53: #{tpu_custom_call.1} parent=1 // pred_fallthru
      _
    %v88 = vld [vmem:[#allocation3] sm:$0xff]
    %v89 = vld [vmem:[#allocation3 + $0x8] sm:$0xff]
    %v90 = vld [vmem:[#allocation3 + $0x10] sm:$0xff]
    %v91 = vld [vmem:[#allocation3 + $0x18] sm:$0xff]
    %v92 = vld [vmem:[#allocation5] sm:$0xff]
    %v93 = vld [vmem:[#allocation5 + $0x8] sm:$0xf]
    %v94 = vld [vmem:[#allocation5 + $0xc] sm:$0xff]
    %v95 = vld [vmem:[#allocation5 + $0x14] sm:$0xf]
    %v96 = vld [vmem:[#allocation5 + $0x18] sm:$0xff]
    %v97 = vld [vmem:[#allocation5 + $0x20] sm:$0xf]
    %v98 = vld [vmem:[#allocation5 + $0x24] sm:$0xff]
    %v99 = vld [vmem:[#allocation5 + $0x2c] sm:$0xf]
    %v100 = vld [vmem:[#allocation5 + $0x30] sm:$0xff]
    %v101 = vld [vmem:[#allocation5 + $0x38] sm:$0xf]
    %v102 = vld [vmem:[#allocation5 + $0x3c] sm:$0xff]
    %v103 = vld [vmem:[#allocation5 + $0x44] sm:$0xf]
    %v104 = vld [vmem:[#allocation5 + $0x48] sm:$0xff]
    %v105 = vld [vmem:[#allocation5 + $0x50] sm:$0xf]
    %v106 = vld [vmem:[#allocation5 + $0x54] sm:$0xff]
    %v107 = vld [vmem:[#allocation5 + $0x5c] sm:$0xf]
    %v108 = vld [vmem:[#allocation5 + $0x60] sm:$0xff]
    %v109 = vld [vmem:[#allocation5 + $0x68] sm:$0xf]
    %v110 = vld [vmem:[#allocation5 + $0x6c] sm:$0xff]
    %v111 = vld [vmem:[#allocation5 + $0x74] sm:$0xf]
    %v112 = vld [vmem:[#allocation5 + $0x78] sm:$0xff]
    %v113 = vld [vmem:[#allocation5 + $0x80] sm:$0xf]
    %v114 = vld [vmem:[#allocation5 + $0x84] sm:$0xff]
    %v115 = vld [vmem:[#allocation5 + $0x8c] sm:$0xf]
    %v116 = vld [vmem:[#allocation5 + $0x90] sm:$0xff]
    %v117 = vld [vmem:[#allocation5 + $0x98] sm:$0xf]
    %v118 = vld [vmem:[#allocation5 + $0x9c] sm:$0xff]
    %v119 = vld [vmem:[#allocation5 + $0xa4] sm:$0xf]
    %v120 = vld [vmem:[#allocation5 + $0xa8] sm:$0xff]
    %v121 = vld [vmem:[#allocation5 + $0xb0] sm:$0xf]
    %v122 = vld [vmem:[#allocation5 + $0xb4] sm:$0xff]
    %v123 = vld [vmem:[#allocation5 + $0xbc] sm:$0xf]
    %v124 = vld [vmem:[#allocation5 + $0xc0] sm:$0xff]
    %v125 = vld [vmem:[#allocation5 + $0xc8] sm:$0xf]
    %v126 = vld [vmem:[#allocation5 + $0xcc] sm:$0xff]
    %v127 = vld [vmem:[#allocation5 + $0xd4] sm:$0xf]
    %v128 = vld [vmem:[#allocation5 + $0xd8] sm:$0xff]
    %v129 = vld [vmem:[#allocation5 + $0xe0] sm:$0xf]
    %v130 = vld [vmem:[#allocation5 + $0xe4] sm:$0xff]
    %v131 = vld [vmem:[#allocation5 + $0xec] sm:$0xf]
    %v132 = vld [vmem:[#allocation5 + $0xf0] sm:$0xff]
    %v133 = vld [vmem:[#allocation5 + $0xf8] sm:$0xf]
    %v134 = vld [vmem:[#allocation5 + $0xfc] sm:$0xff]
    %v135 = vld [vmem:[#allocation5 + $0x104] sm:$0xf]
    %v136 = vld [vmem:[#allocation5 + $0x108] sm:$0xff]
    %v137 = vld [vmem:[#allocation5 + $0x110] sm:$0xf]
    %v138 = vld [vmem:[#allocation5 + $0x114] sm:$0xff]
    %v139 = vld [vmem:[#allocation5 + $0x11c] sm:$0xf]
    %v140 = vld [vmem:[#allocation5 + $0x120] sm:$0xff]
    %v141 = vld [vmem:[#allocation5 + $0x128] sm:$0xf]
    %v142 = vld [vmem:[#allocation5 + $0x12c] sm:$0xff]
    %v143 = vld [vmem:[#allocation5 + $0x134] sm:$0xf]
    %v144 = vld [vmem:[#allocation5 + $0x138] sm:$0xff]
    %v145 = vld [vmem:[#allocation5 + $0x140] sm:$0xf]
    %v146 = vld [vmem:[#allocation5 + $0x144] sm:$0xff]
    %v147 = vld [vmem:[#allocation5 + $0x14c] sm:$0xf]
    %v148 = vld [vmem:[#allocation5 + $0x150] sm:$0xff]
    %v149 = vld [vmem:[#allocation5 + $0x158] sm:$0xf]
    %v150 = vld [vmem:[#allocation5 + $0x15c] sm:$0xff]
    %v151 = vld [vmem:[#allocation5 + $0x164] sm:$0xf]
    %v152 = vld [vmem:[#allocation5 + $0x168] sm:$0xff]
    %v153 = vld [vmem:[#allocation5 + $0x170] sm:$0xf]
    %v154 = vld [vmem:[#allocation5 + $0x174] sm:$0xff]
    %v155 = vld [vmem:[#allocation5 + $0x17c] sm:$0xf]
    %v156 = vld [vmem:[#allocation5 + $0x180] sm:$0xff]
    %v157 = vld [vmem:[#allocation5 + $0x188] sm:$0xf]
    %v158 = vld [vmem:[#allocation5 + $0x18c] sm:$0xff]
    %v159 = vld [vmem:[#allocation5 + $0x194] sm:$0xf]
    %v160 = vld [vmem:[#allocation5 + $0x198] sm:$0xff]
    %v161 = vld [vmem:[#allocation5 + $0x1a0] sm:$0xf]
    %v162 = vld [vmem:[#allocation5 + $0x1a4] sm:$0xff]
    %v163 = vld [vmem:[#allocation5 + $0x1ac] sm:$0xf]
    %v164 = vld [vmem:[#allocation5 + $0x1b0] sm:$0xff]
    %v165 = vld [vmem:[#allocation5 + $0x1b8] sm:$0xf]
    %v166 = vld [vmem:[#allocation5 + $0x1bc] sm:$0xff]
    %v167 = vld [vmem:[#allocation5 + $0x1c4] sm:$0xf]
    %v168 = vld [vmem:[#allocation5 + $0x1c8] sm:$0xff]
    %v169 = vld [vmem:[#allocation5 + $0x1d0] sm:$0xf]
    %v170 = vld [vmem:[#allocation5 + $0x1d4] sm:$0xff]
    %v171 = vld [vmem:[#allocation5 + $0x1dc] sm:$0xf]
    %v172 = vld [vmem:[#allocation5 + $0x1e0] sm:$0xff]
    %v173 = vld [vmem:[#allocation5 + $0x1e8] sm:$0xf]
    %v174 = vld [vmem:[#allocation5 + $0x1ec] sm:$0xff]
    %v175 = vld [vmem:[#allocation5 + $0x1f4] sm:$0xf]
    %v176 = vld [vmem:[#allocation5 + $0x1f8] sm:$0xff]
    %v177 = vld [vmem:[#allocation5 + $0x200] sm:$0xf]
    %v178 = vld [vmem:[#allocation5 + $0x204] sm:$0xff]
    %v179 = vld [vmem:[#allocation5 + $0x20c] sm:$0xf]
    %v180 = vld [vmem:[#allocation5 + $0x210] sm:$0xff]
    %v181 = vld [vmem:[#allocation5 + $0x218] sm:$0xf]
    %v182 = vld [vmem:[#allocation5 + $0x21c] sm:$0xff]
    %v183 = vld [vmem:[#allocation5 + $0x224] sm:$0xf]
    %v184 = vld [vmem:[#allocation5 + $0x228] sm:$0xff]
    %v185 = vld [vmem:[#allocation5 + $0x230] sm:$0xf]
    %v186 = vld [vmem:[#allocation5 + $0x234] sm:$0xff]
    %v187 = vld [vmem:[#allocation5 + $0x23c] sm:$0xf]
    %v188 = vld [vmem:[#allocation5 + $0x240] sm:$0xff]
    %v189 = vld [vmem:[#allocation5 + $0x248] sm:$0xf]
    %v190 = vld [vmem:[#allocation5 + $0x24c] sm:$0xff]
    %v191 = vld [vmem:[#allocation5 + $0x254] sm:$0xf]
    %v192 = vld [vmem:[#allocation5 + $0x258] sm:$0xff]
    %v193 = vld [vmem:[#allocation5 + $0x260] sm:$0xf]
    %v194 = vld [vmem:[#allocation5 + $0x264] sm:$0xff]
    %v195 = vld [vmem:[#allocation5 + $0x26c] sm:$0xf]
    %v196 = vld [vmem:[#allocation5 + $0x270] sm:$0xff]
    %v197 = vld [vmem:[#allocation5 + $0x278] sm:$0xf]
    %v198 = vld [vmem:[#allocation5 + $0x27c] sm:$0xff]
    %v199 = vld [vmem:[#allocation5 + $0x284] sm:$0xf]
    %v200 = vld [vmem:[#allocation5 + $0x288] sm:$0xff]
    %v201 = vld [vmem:[#allocation5 + $0x290] sm:$0xf]
    %v202 = vld [vmem:[#allocation5 + $0x294] sm:$0xff]
    %v203 = vld [vmem:[#allocation5 + $0x29c] sm:$0xf]
    %v204 = vld [vmem:[#allocation5 + $0x2a0] sm:$0xff]
    %v205 = vld [vmem:[#allocation5 + $0x2a8] sm:$0xf]
    %v206 = vld [vmem:[#allocation5 + $0x2ac] sm:$0xff]
    %v207 = vld [vmem:[#allocation5 + $0x2b4] sm:$0xf]
    %v208 = vld [vmem:[#allocation5 + $0x2b8] sm:$0xff]
    %v209 = vld [vmem:[#allocation5 + $0x2c0] sm:$0xf]
    %v210 = vld [vmem:[#allocation5 + $0x2c4] sm:$0xff]
    %v211 = vld [vmem:[#allocation5 + $0x2cc] sm:$0xf]
    %v212 = vld [vmem:[#allocation5 + $0x2d0] sm:$0xff]
    %v213 = vld [vmem:[#allocation5 + $0x2d8] sm:$0xf]
    %v214 = vld [vmem:[#allocation5 + $0x2dc] sm:$0xff]
    %v215 = vld [vmem:[#allocation5 + $0x2e4] sm:$0xf]
    %v216 = vld [vmem:[#allocation5 + $0x2e8] sm:$0xff]
    %v217 = vld [vmem:[#allocation5 + $0x2f0] sm:$0xf]
    %v218 = vld [vmem:[#allocation5 + $0x2f4] sm:$0xff]
    %v219 = vld [vmem:[#allocation5 + $0x2fc] sm:$0xf]
    %v220 = vld [vmem:[%s2] sm:$0x7]
    %v222 = vlaneseq
    %v223 = vshrl.u32 %v222, 7
    %v224 = vsub.s32 0, %v223
    %v225 = vrot.slane %v220, %v224
    %v226 = vlaneseq
    %v227 = vshrl.u32 %v226, 7
    %v228 = vsub.s32 1, %v227
    %v229 = vrot.slane %v220, %v228
    %v230 = vlaneseq
    %v231 = vshrl.u32 %v230, 7
    %v232 = vsub.s32 2, %v231
    %v233 = vrot.slane %v220, %v232
    %v241 = vunpack.c.l.b16 %v88
    %v242 = vunpack.c.h.b16 %v88
    %v243 = vunpack.c.l.b16 %v89
    %v244 = vunpack.c.h.b16 %v89
    %v245 = vunpack.c.l.b16 %v90
    %v246 = vunpack.c.h.b16 %v90
    %v247 = vunpack.c.l.b16 %v91
    %v248 = vunpack.c.h.b16 %v91
    %v249 = vpack.c.b16 %v245, %v241
    %v250 = vpack.c.b16 %v246, %v242
    %v251 = vpack.c.b16 %v247, %v243
    %v252 = vpack.c.b16 %v248, %v244
    %v385 = vunpack.c.l.b16 %v92
    %v386 = vunpack.c.h.b16 %v92
    %v387 = vunpack.c.l.b16 %v93
    %v388 = vunpack.c.l.b16 %v94
    %v389 = vunpack.c.h.b16 %v94
    %v390 = vunpack.c.l.b16 %v95
    %v391 = vunpack.c.l.b16 %v96
    %v392 = vunpack.c.h.b16 %v96
    %v393 = vunpack.c.l.b16 %v97
    %v394 = vunpack.c.l.b16 %v98
    %v395 = vunpack.c.h.b16 %v98
    %v396 = vunpack.c.l.b16 %v99
    %v397 = vunpack.c.l.b16 %v100
    %v398 = vunpack.c.h.b16 %v100
    %v399 = vunpack.c.l.b16 %v101
    %v400 = vunpack.c.l.b16 %v102
    %v401 = vunpack.c.h.b16 %v102
    %v402 = vunpack.c.l.b16 %v103
    %v403 = vunpack.c.l.b16 %v104
    %v404 = vunpack.c.h.b16 %v104
    %v405 = vunpack.c.l.b16 %v105
    %v406 = vunpack.c.l.b16 %v106
    %v407 = vunpack.c.h.b16 %v106
    %v408 = vunpack.c.l.b16 %v107
    %v409 = vunpack.c.l.b16 %v108
    %v410 = vunpack.c.h.b16 %v108
    %v411 = vunpack.c.l.b16 %v109
    %v412 = vunpack.c.l.b16 %v110
    %v413 = vunpack.c.h.b16 %v110
    %v414 = vunpack.c.l.b16 %v111
    %v415 = vunpack.c.l.b16 %v112
    %v416 = vunpack.c.h.b16 %v112
    %v417 = vunpack.c.l.b16 %v113
    %v418 = vunpack.c.l.b16 %v114
    %v419 = vunpack.c.h.b16 %v114
    %v420 = vunpack.c.l.b16 %v115
    %v421 = vunpack.c.l.b16 %v116
    %v422 = vunpack.c.h.b16 %v116
    %v423 = vunpack.c.l.b16 %v117
    %v424 = vunpack.c.l.b16 %v118
    %v425 = vunpack.c.h.b16 %v118
    %v426 = vunpack.c.l.b16 %v119
    %v427 = vunpack.c.l.b16 %v120
    %v428 = vunpack.c.h.b16 %v120
    %v429 = vunpack.c.l.b16 %v121
    %v430 = vunpack.c.l.b16 %v122
    %v431 = vunpack.c.h.b16 %v122
    %v432 = vunpack.c.l.b16 %v123
    %v433 = vunpack.c.l.b16 %v124
    %v434 = vunpack.c.h.b16 %v124
    %v435 = vunpack.c.l.b16 %v125
    %v436 = vunpack.c.l.b16 %v126
    %v437 = vunpack.c.h.b16 %v126
    %v438 = vunpack.c.l.b16 %v127
    %v439 = vunpack.c.l.b16 %v128
    %v440 = vunpack.c.h.b16 %v128
    %v441 = vunpack.c.l.b16 %v129
    %v442 = vunpack.c.l.b16 %v130
    %v443 = vunpack.c.h.b16 %v130
    %v444 = vunpack.c.l.b16 %v131
    %v445 = vunpack.c.l.b16 %v132
    %v446 = vunpack.c.h.b16 %v132
    %v447 = vunpack.c.l.b16 %v133
    %v448 = vunpack.c.l.b16 %v134
    %v449 = vunpack.c.h.b16 %v134
    %v450 = vunpack.c.l.b16 %v135
    %v451 = vunpack.c.l.b16 %v136
    %v452 = vunpack.c.h.b16 %v136
    %v453 = vunpack.c.l.b16 %v137
    %v454 = vunpack.c.l.b16 %v138
    %v455 = vunpack.c.h.b16 %v138
    %v456 = vunpack.c.l.b16 %v139
    %v457 = vunpack.c.l.b16 %v140
    %v458 = vunpack.c.h.b16 %v140
    %v459 = vunpack.c.l.b16 %v141
    %v460 = vunpack.c.l.b16 %v142
    %v461 = vunpack.c.h.b16 %v142
    %v462 = vunpack.c.l.b16 %v143
    %v463 = vunpack.c.l.b16 %v144
    %v464 = vunpack.c.h.b16 %v144
    %v465 = vunpack.c.l.b16 %v145
    %v466 = vunpack.c.l.b16 %v146
    %v467 = vunpack.c.h.b16 %v146
    %v468 = vunpack.c.l.b16 %v147
    %v469 = vunpack.c.l.b16 %v148
    %v470 = vunpack.c.h.b16 %v148
    %v471 = vunpack.c.l.b16 %v149
    %v472 = vunpack.c.l.b16 %v150
    %v473 = vunpack.c.h.b16 %v150
    %v474 = vunpack.c.l.b16 %v151
    %v475 = vunpack.c.l.b16 %v152
    %v476 = vunpack.c.h.b16 %v152
    %v477 = vunpack.c.l.b16 %v153
    %v478 = vunpack.c.l.b16 %v154
    %v479 = vunpack.c.h.b16 %v154
    %v480 = vunpack.c.l.b16 %v155
    %v481 = vunpack.c.l.b16 %v156
    %v482 = vunpack.c.h.b16 %v156
    %v483 = vunpack.c.l.b16 %v157
    %v484 = vunpack.c.l.b16 %v158
    %v485 = vunpack.c.h.b16 %v158
    %v486 = vunpack.c.l.b16 %v159
    %v487 = vunpack.c.l.b16 %v160
    %v488 = vunpack.c.h.b16 %v160
    %v489 = vunpack.c.l.b16 %v161
    %v490 = vunpack.c.l.b16 %v162
    %v491 = vunpack.c.h.b16 %v162
    %v492 = vunpack.c.l.b16 %v163
    %v493 = vunpack.c.l.b16 %v164
    %v494 = vunpack.c.h.b16 %v164
    %v495 = vunpack.c.l.b16 %v165
    %v496 = vunpack.c.l.b16 %v166
    %v497 = vunpack.c.h.b16 %v166
    %v498 = vunpack.c.l.b16 %v167
    %v499 = vunpack.c.l.b16 %v168
    %v500 = vunpack.c.h.b16 %v168
    %v501 = vunpack.c.l.b16 %v169
    %v502 = vunpack.c.l.b16 %v170
    %v503 = vunpack.c.h.b16 %v170
    %v504 = vunpack.c.l.b16 %v171
    %v505 = vunpack.c.l.b16 %v172
    %v506 = vunpack.c.h.b16 %v172
    %v507 = vunpack.c.l.b16 %v173
    %v508 = vunpack.c.l.b16 %v174
    %v509 = vunpack.c.h.b16 %v174
    %v510 = vunpack.c.l.b16 %v175
    %v511 = vunpack.c.l.b16 %v176
    %v512 = vunpack.c.h.b16 %v176
    %v513 = vunpack.c.l.b16 %v177
    %v514 = vunpack.c.l.b16 %v178
    %v515 = vunpack.c.h.b16 %v178
    %v516 = vunpack.c.l.b16 %v179
    %v517 = vunpack.c.l.b16 %v180
    %v518 = vunpack.c.h.b16 %v180
    %v519 = vunpack.c.l.b16 %v181
    %v520 = vunpack.c.l.b16 %v182
    %v521 = vunpack.c.h.b16 %v182
    %v522 = vunpack.c.l.b16 %v183
    %v523 = vunpack.c.l.b16 %v184
    %v524 = vunpack.c.h.b16 %v184
    %v525 = vunpack.c.l.b16 %v185
    %v526 = vunpack.c.l.b16 %v186
    %v527 = vunpack.c.h.b16 %v186
    %v528 = vunpack.c.l.b16 %v187
    %v529 = vunpack.c.l.b16 %v188
    %v530 = vunpack.c.h.b16 %v188
    %v531 = vunpack.c.l.b16 %v189
    %v532 = vunpack.c.l.b16 %v190
    %v533 = vunpack.c.h.b16 %v190
    %v534 = vunpack.c.l.b16 %v191
    %v535 = vunpack.c.l.b16 %v192
    %v536 = vunpack.c.h.b16 %v192
    %v537 = vunpack.c.l.b16 %v193
    %v538 = vunpack.c.l.b16 %v194
    %v539 = vunpack.c.h.b16 %v194
    %v540 = vunpack.c.l.b16 %v195
    %v541 = vunpack.c.l.b16 %v196
    %v542 = vunpack.c.h.b16 %v196
    %v543 = vunpack.c.l.b16 %v197
    %v544 = vunpack.c.l.b16 %v198
    %v545 = vunpack.c.h.b16 %v198
    %v546 = vunpack.c.l.b16 %v199
    %v547 = vunpack.c.l.b16 %v200
    %v548 = vunpack.c.h.b16 %v200
    %v549 = vunpack.c.l.b16 %v201
    %v550 = vunpack.c.l.b16 %v202
    %v551 = vunpack.c.h.b16 %v202
    %v552 = vunpack.c.l.b16 %v203
    %v553 = vunpack.c.l.b16 %v204
    %v554 = vunpack.c.h.b16 %v204
    %v555 = vunpack.c.l.b16 %v205
    %v556 = vunpack.c.l.b16 %v206
    %v557 = vunpack.c.h.b16 %v206
    %v558 = vunpack.c.l.b16 %v207
    %v559 = vunpack.c.l.b16 %v208
    %v560 = vunpack.c.h.b16 %v208
    %v561 = vunpack.c.l.b16 %v209
    %v562 = vunpack.c.l.b16 %v210
    %v563 = vunpack.c.h.b16 %v210
    %v564 = vunpack.c.l.b16 %v211
    %v565 = vunpack.c.l.b16 %v212
    %v566 = vunpack.c.h.b16 %v212
    %v567 = vunpack.c.l.b16 %v213
    %v568 = vunpack.c.l.b16 %v214
    %v569 = vunpack.c.h.b16 %v214
    %v570 = vunpack.c.l.b16 %v215
    %v571 = vunpack.c.l.b16 %v216
    %v572 = vunpack.c.h.b16 %v216
    %v573 = vunpack.c.l.b16 %v217
    %v574 = vunpack.c.l.b16 %v218
    %v575 = vunpack.c.h.b16 %v218
    %v576 = vunpack.c.l.b16 %v219
    %v577 = vpack.c.b16 %v388, %v385
    %v578 = vpack.c.b16 %v389, %v386
    %v579 = vpack.c.b16 %v390, %v387
    %v580 = vpack.c.b16 %v394, %v391
    %v581 = vpack.c.b16 %v395, %v392
    %v582 = vpack.c.b16 %v396, %v393
    %v583 = vpack.c.b16 %v400, %v397
    %v584 = vpack.c.b16 %v401, %v398
    %v585 = vpack.c.b16 %v402, %v399
    %v586 = vpack.c.b16 %v406, %v403
    %v587 = vpack.c.b16 %v407, %v404
    %v588 = vpack.c.b16 %v408, %v405
    %v589 = vpack.c.b16 %v412, %v409
    %v590 = vpack.c.b16 %v413, %v410
    %v591 = vpack.c.b16 %v414, %v411
    %v592 = vpack.c.b16 %v418, %v415
    %v593 = vpack.c.b16 %v419, %v416
    %v594 = vpack.c.b16 %v420, %v417
    %v595 = vpack.c.b16 %v424, %v421
    %v596 = vpack.c.b16 %v425, %v422
    %v597 = vpack.c.b16 %v426, %v423
    %v598 = vpack.c.b16 %v430, %v427
    %v599 = vpack.c.b16 %v431, %v428
    %v600 = vpack.c.b16 %v432, %v429
    %v601 = vpack.c.b16 %v436, %v433
    %v602 = vpack.c.b16 %v437, %v434
    %v603 = vpack.c.b16 %v438, %v435
    %v604 = vpack.c.b16 %v442, %v439
    %v605 = vpack.c.b16 %v443, %v440
    %v606 = vpack.c.b16 %v444, %v441
    %v607 = vpack.c.b16 %v448, %v445
    %v608 = vpack.c.b16 %v449, %v446
    %v609 = vpack.c.b16 %v450, %v447
    %v610 = vpack.c.b16 %v454, %v451
    %v611 = vpack.c.b16 %v455, %v452
    %v612 = vpack.c.b16 %v456, %v453
    %v613 = vpack.c.b16 %v460, %v457
    %v614 = vpack.c.b16 %v461, %v458
    %v615 = vpack.c.b16 %v462, %v459
    %v616 = vpack.c.b16 %v466, %v463
    %v617 = vpack.c.b16 %v467, %v464
    %v618 = vpack.c.b16 %v468, %v465
    %v619 = vpack.c.b16 %v472, %v469
    %v620 = vpack.c.b16 %v473, %v470
    %v621 = vpack.c.b16 %v474, %v471
    %v622 = vpack.c.b16 %v478, %v475
    %v623 = vpack.c.b16 %v479, %v476
    %v624 = vpack.c.b16 %v480, %v477
    %v625 = vpack.c.b16 %v484, %v481
    %v626 = vpack.c.b16 %v485, %v482
    %v627 = vpack.c.b16 %v486, %v483
    %v628 = vpack.c.b16 %v490, %v487
    %v629 = vpack.c.b16 %v491, %v488
    %v630 = vpack.c.b16 %v492, %v489
    %v631 = vpack.c.b16 %v496, %v493
    %v632 = vpack.c.b16 %v497, %v494
    %v633 = vpack.c.b16 %v498, %v495
    %v634 = vpack.c.b16 %v502, %v499
    %v635 = vpack.c.b16 %v503, %v500
    %v636 = vpack.c.b16 %v504, %v501
    %v637 = vpack.c.b16 %v508, %v505
    %v638 = vpack.c.b16 %v509, %v506
    %v639 = vpack.c.b16 %v510, %v507
    %v640 = vpack.c.b16 %v514, %v511
    %v641 = vpack.c.b16 %v515, %v512
    %v642 = vpack.c.b16 %v516, %v513
    %v643 = vpack.c.b16 %v520, %v517
    %v644 = vpack.c.b16 %v521, %v518
    %v645 = vpack.c.b16 %v522, %v519
    %v646 = vpack.c.b16 %v526, %v523
    %v647 = vpack.c.b16 %v527, %v524
    %v648 = vpack.c.b16 %v528, %v525
    %v649 = vpack.c.b16 %v532, %v529
    %v650 = vpack.c.b16 %v533, %v530
    %v651 = vpack.c.b16 %v534, %v531
    %v652 = vpack.c.b16 %v538, %v535
    %v653 = vpack.c.b16 %v539, %v536
    %v654 = vpack.c.b16 %v540, %v537
    %v655 = vpack.c.b16 %v544, %v541
    %v656 = vpack.c.b16 %v545, %v542
    %v657 = vpack.c.b16 %v546, %v543
    %v658 = vpack.c.b16 %v550, %v547
    %v659 = vpack.c.b16 %v551, %v548
    %v660 = vpack.c.b16 %v552, %v549
    %v661 = vpack.c.b16 %v556, %v553
    %v662 = vpack.c.b16 %v557, %v554
    %v663 = vpack.c.b16 %v558, %v555
    %v664 = vpack.c.b16 %v562, %v559
    %v665 = vpack.c.b16 %v563, %v560
    %v666 = vpack.c.b16 %v564, %v561
    %v667 = vpack.c.b16 %v568, %v565
    %v668 = vpack.c.b16 %v569, %v566
    %v669 = vpack.c.b16 %v570, %v567
    %v670 = vpack.c.b16 %v574, %v571
    %v671 = vpack.c.b16 %v575, %v572
    %v672 = vpack.c.b16 %v576, %v573
    %769 = vmatprep.subr.bf16.mxu0 %v599
    %770 = vmatpush1.bf16.msra.mxu0 %v598
    %771 = vmatprep.subr.bf16.mxu0 %v596
    %772 = vmatpush1.bf16.msra.mxu0 %v595
    %773 = vmatprep.subr.bf16.mxu0 %v593
    %774 = vmatpush1.bf16.msra.mxu0 %v592
    %775 = vmatprep.subr.bf16.mxu0 %v590
    %776 = vmatpush1.bf16.msra.mxu0 %v589
    %777 = vmatprep.subr.bf16.mxu0 %v587
    %778 = vmatpush1.bf16.msra.mxu0 %v586
    %779 = vmatprep.subr.bf16.mxu0 %v584
    %780 = vmatpush1.bf16.msra.mxu0 %v583
    %781 = vmatprep.subr.bf16.mxu0 %v581
    %782 = vmatpush1.bf16.msra.mxu0 %v580
    %783 = vmatprep.subr.bf16.mxu0 %v578
    %784 = vmatpush1.bf16.msra.mxu0 %v577
    %785 = vmatprep.subr.bf16.mxu0 %v623
    %786 = vmatpush2.bf16.msra.mxu0 %v622
    %787 = vmatprep.subr.bf16.mxu0 %v620
    %788 = vmatpush2.bf16.msra.mxu0 %v619
    %789 = vmatprep.subr.bf16.mxu0 %v617
    %790 = vmatpush2.bf16.msra.mxu0 %v616
    %791 = vmatprep.subr.bf16.mxu0 %v614
    %792 = vmatpush2.bf16.msra.mxu0 %v613
    %793 = vmatprep.subr.bf16.mxu0 %v611
    %794 = vmatpush2.bf16.msra.mxu0 %v610
    %795 = vmatprep.subr.bf16.mxu0 %v608
    %796 = vmatpush2.bf16.msra.mxu0 %v607
    %797 = vmatprep.subr.bf16.mxu0 %v605
    %798 = vmatpush2.bf16.msra.mxu0 %v604
    %799 = vmatprep.subr.bf16.mxu0 %v602
    %800 = vmatpush2.bf16.msra.mxu0 %v601
    %801 = vmatprep.mubr.bf16.mxu0 %v250
    %802 = vmatmul.mubr.bf16.gmra.mxu0 %v249
    %v803 = vpop.f32.mrf.mxu0
    %v804 = vadd.f32 %v225, %v803
    %v805 = vpop.f32.mrf.mxu0
    %v806 = vadd.f32 %v229, %v805
    %v807 = vpop.f32.mrf.mxu0
    %v808 = vadd.f32 %v225, %v807
    %v809 = vpop.f32.mrf.mxu0
    %v810 = vadd.f32 %v229, %v809
    %811 = vdwg.mxu0
    %812 = vmatprep.subr.bf16.mxu0 %v647
    %813 = vmatpush1.bf16.msra.mxu0 %v646
    %814 = vmatprep.subr.bf16.mxu0 %v644
    %815 = vmatpush1.bf16.msra.mxu0 %v643
    %816 = vmatprep.subr.bf16.mxu0 %v641
    %817 = vmatpush1.bf16.msra.mxu0 %v640
    %818 = vmatprep.subr.bf16.mxu0 %v638
    %819 = vmatpush1.bf16.msra.mxu0 %v637
    %820 = vmatprep.subr.bf16.mxu0 %v635
    %821 = vmatpush1.bf16.msra.mxu0 %v634
    %822 = vmatprep.subr.bf16.mxu0 %v632
    %823 = vmatpush1.bf16.msra.mxu0 %v631
    %824 = vmatprep.subr.bf16.mxu0 %v629
    %825 = vmatpush1.bf16.msra.mxu0 %v628
    %826 = vmatprep.subr.bf16.mxu0 %v626
    %827 = vmatpush1.bf16.msra.mxu0 %v625
    %828 = vmatprep.subr.bf16.mxu0 %v671
    %829 = vmatpush2.bf16.msra.mxu0 %v670
    %830 = vmatprep.subr.bf16.mxu0 %v668
    %831 = vmatpush2.bf16.msra.mxu0 %v667
    %832 = vmatprep.subr.bf16.mxu0 %v665
    %833 = vmatpush2.bf16.msra.mxu0 %v664
    %834 = vmatprep.subr.bf16.mxu0 %v662
    %835 = vmatpush2.bf16.msra.mxu0 %v661
    %836 = vmatprep.subr.bf16.mxu0 %v659
    %837 = vmatpush2.bf16.msra.mxu0 %v658
    %838 = vmatprep.subr.bf16.mxu0 %v656
    %839 = vmatpush2.bf16.msra.mxu0 %v655
    %840 = vmatprep.subr.bf16.mxu0 %v653
    %841 = vmatpush2.bf16.msra.mxu0 %v652
    %842 = vmatprep.subr.bf16.mxu0 %v650
    %843 = vmatpush2.bf16.msra.mxu0 %v649
    %844 = vmatprep.mubr.bf16.mxu0 %v252
    %845 = vmatmul.mubr.bf16.gmra.mxu0 %v251
    %v846 = vpop.f32.mrf.mxu0
    %v847 = vadd.f32 %v804, %v846
    %v848 = vpop.f32.mrf.mxu0
    %v849 = vadd.f32 %v806, %v848
    %v850 = vpop.f32.mrf.mxu0
    %v851 = vadd.f32 %v808, %v850
    %v852 = vpop.f32.mrf.mxu0
    %v853 = vadd.f32 %v810, %v852
    %854 = vdwg.mxu0
    %855 = vmatprep.subr.bf16.mxu0 0
    %856 = vmatpush1.bf16.msra.mxu0 %v600
    %857 = vmatprep.subr.bf16.mxu0 0
    %858 = vmatpush1.bf16.msra.mxu0 %v597
    %859 = vmatprep.subr.bf16.mxu0 0
    %860 = vmatpush1.bf16.msra.mxu0 %v594
    %861 = vmatprep.subr.bf16.mxu0 0
    %862 = vmatpush1.bf16.msra.mxu0 %v591
    %863 = vmatprep.subr.bf16.mxu0 0
    %864 = vmatpush1.bf16.msra.mxu0 %v588
    %865 = vmatprep.subr.bf16.mxu0 0
    %866 = vmatpush1.bf16.msra.mxu0 %v585
    %867 = vmatprep.subr.bf16.mxu0 0
    %868 = vmatpush1.bf16.msra.mxu0 %v582
    %869 = vmatprep.subr.bf16.mxu0 0
    %870 = vmatpush1.bf16.msra.mxu0 %v579
    %871 = vmatprep.subr.bf16.mxu0 0
    %872 = vmatpush2.bf16.msra.mxu0 %v624
    %873 = vmatprep.subr.bf16.mxu0 0
    %874 = vmatpush2.bf16.msra.mxu0 %v621
    %875 = vmatprep.subr.bf16.mxu0 0
    %876 = vmatpush2.bf16.msra.mxu0 %v618
    %877 = vmatprep.subr.bf16.mxu0 0
    %878 = vmatpush2.bf16.msra.mxu0 %v615
    %879 = vmatprep.subr.bf16.mxu0 0
    %880 = vmatpush2.bf16.msra.mxu0 %v612
    %881 = vmatprep.subr.bf16.mxu0 0
    %882 = vmatpush2.bf16.msra.mxu0 %v609
    %883 = vmatprep.subr.bf16.mxu0 0
    %884 = vmatpush2.bf16.msra.mxu0 %v606
    %885 = vmatprep.subr.bf16.mxu0 0
    %886 = vmatpush2.bf16.msra.mxu0 %v603
    %887 = vmatprep.mubr.bf16.mxu0 %v250
    %888 = vmatmul.mubr.bf16.gmra.mxu0 %v249
    %v889 = vpop.f32.mrf.mxu0
    %v890 = vadd.f32 %v233, %v889
    %v891 = vpop.f32.mrf.mxu0
    %v892 = vpop.f32.mrf.mxu0
    %v893 = vadd.f32 %v233, %v892
    %v894 = vpop.f32.mrf.mxu0
    %895 = vdwg.mxu0
    %896 = vmatprep.subr.bf16.mxu0 0
    %897 = vmatpush1.bf16.msra.mxu0 %v648
    %898 = vmatprep.subr.bf16.mxu0 0
    %899 = vmatpush1.bf16.msra.mxu0 %v645
    %900 = vmatprep.subr.bf16.mxu0 0
    %901 = vmatpush1.bf16.msra.mxu0 %v642
    %902 = vmatprep.subr.bf16.mxu0 0
    %903 = vmatpush1.bf16.msra.mxu0 %v639
    %904 = vmatprep.subr.bf16.mxu0 0
    %905 = vmatpush1.bf16.msra.mxu0 %v636
    %906 = vmatprep.subr.bf16.mxu0 0
    %907 = vmatpush1.bf16.msra.mxu0 %v633
    %908 = vmatprep.subr.bf16.mxu0 0
    %909 = vmatpush1.bf16.msra.mxu0 %v630
    %910 = vmatprep.subr.bf16.mxu0 0
    %911 = vmatpush1.bf16.msra.mxu0 %v627
    %912 = vmatprep.subr.bf16.mxu0 0
    %913 = vmatpush2.bf16.msra.mxu0 %v672
    %914 = vmatprep.subr.bf16.mxu0 0
    %915 = vmatpush2.bf16.msra.mxu0 %v669
    %916 = vmatprep.subr.bf16.mxu0 0
    %917 = vmatpush2.bf16.msra.mxu0 %v666
    %918 = vmatprep.subr.bf16.mxu0 0
    %919 = vmatpush2.bf16.msra.mxu0 %v663
    %920 = vmatprep.subr.bf16.mxu0 0
    %921 = vmatpush2.bf16.msra.mxu0 %v660
    %922 = vmatprep.subr.bf16.mxu0 0
    %923 = vmatpush2.bf16.msra.mxu0 %v657
    %924 = vmatprep.subr.bf16.mxu0 0
    %925 = vmatpush2.bf16.msra.mxu0 %v654
    %926 = vmatprep.subr.bf16.mxu0 0
    %927 = vmatpush2.bf16.msra.mxu0 %v651
    %928 = vmatprep.mubr.bf16.mxu0 %v252
    %929 = vmatmul.mubr.bf16.gmra.mxu0 %v251
    %v930 = vpop.f32.mrf.mxu0
    %v931 = vadd.f32 %v890, %v930
    %v932 = vpop.f32.mrf.mxu0
    %v933 = vpop.f32.mrf.mxu0
    %v934 = vadd.f32 %v893, %v933
    %v935 = vpop.f32.mrf.mxu0
    %936 = vdwg.mxu0
    %v937 = vld [vmem:[%s3] sm:$0x7]
    %v938 = vld [vmem:[%s4] sm:$0x7]
    %v939 = vlaneseq
    %v940 = vand.u32 %v939, 127
    %v941 = vadd.s32 %v940, 128
    %v942 = vadd.s32 %v940, 256
    %vm943 = vcmp.lt.s32.totalorder %v940, 300
    %vm944 = vcmp.lt.s32.totalorder %v941, 300
    %vm945 = vcmp.lt.s32.totalorder %v942, 300
    %v946 = vsel %vm943, 1, 0
    %v947 = vsel %vm944, 1, 0
    %v948 = vsel %vm945, 1, 0
    %v949 = vcvt.s32.f32 %v946
    %v950 = vcvt.s32.f32 %v947
    %v951 = vcvt.s32.f32 %v948
    %v952 = vmul.f32 %v847, %v949
    %v953 = vmul.f32 %v849, %v950
    %v954 = vmul.f32 %v931, %v951
    %v955 = vmul.f32 %v851, %v949
    %v956 = vmul.f32 %v853, %v950
    %v957 = vmul.f32 %v934, %v951
    %v958 = vadd.f32 %v952, %v953
    %v959 = vadd.f32 %v958, %v954
    %960 = vadd.xlane.f32.xlu0 %v959
    %v961 = vpop.xlane.xlu0 %960
    %v962 = vadd.f32 %v955, %v956
    %v963 = vadd.f32 %v962, %v957
    %964 = vadd.xlane.f32.xlu0 %v963
    %v965 = vpop.xlane.xlu0 %964
    %v966 = vmul.f32 %v961, 0.0033333334
    %v967 = vmul.f32 %v965, 0.0033333334
    %v968 = vsub.f32 %v952, %v966
    %v969 = vsub.f32 %v953, %v966
    %v970 = vsub.f32 %v954, %v966
    %v971 = vsub.f32 %v955, %v967
    %v972 = vsub.f32 %v956, %v967
    %v973 = vsub.f32 %v957, %v967
    %v974 = vmul.f32 %v968, %v949
    %v975 = vmul.f32 %v969, %v950
    %v976 = vmul.f32 %v970, %v951
    %v977 = vmul.f32 %v971, %v949
    %v978 = vmul.f32 %v972, %v950
    %v979 = vmul.f32 %v973, %v951
    %v980 = vmul.f32 %v974, %v974
    %v981 = vmul.f32 %v975, %v975
    %v982 = vmul.f32 %v976, %v976
    %v983 = vmul.f32 %v977, %v977
    %v984 = vmul.f32 %v978, %v978
    %v985 = vmul.f32 %v979, %v979
    %v986 = vadd.f32 %v980, %v981
    %v987 = vadd.f32 %v986, %v982
    %988 = vadd.xlane.f32.xlu0 %v987
    %v989 = vpop.xlane.xlu0 %988
    %v990 = vadd.f32 %v983, %v984
    %v991 = vadd.f32 %v990, %v985
    %992 = vadd.xlane.f32.xlu0 %v991
    %v993 = vpop.xlane.xlu0 %992
    %v994 = vmul.f32 %v989, 0.0033333334
    %v995 = vmul.f32 %v993, 0.0033333334
    %v996 = vadd.f32 %v994, 1e-05
    %v997 = vadd.f32 %v995, 1e-05
    %v998 = vrsqrt.pop %v996
    %v999 = vrsqrt.pop %v997
    %v1000 = vmul.f32 %v974, %v998
    %v1001 = vmul.f32 %v975, %v998
    %v1002 = vmul.f32 %v976, %v998
    %v1003 = vmul.f32 %v977, %v999
    %v1004 = vmul.f32 %v978, %v999
    %v1005 = vmul.f32 %v979, %v999
    %v1007 = vlaneseq
    %v1008 = vshrl.u32 %v1007, 7
    %v1009 = vsub.s32 0, %v1008
    %v1010 = vrot.slane %v937, %v1009
    %v1011 = vlaneseq
    %v1012 = vshrl.u32 %v1011, 7
    %v1013 = vsub.s32 1, %v1012
    %v1014 = vrot.slane %v937, %v1013
    %v1015 = vlaneseq
    %v1016 = vshrl.u32 %v1015, 7
    %v1017 = vsub.s32 2, %v1016
    %v1018 = vrot.slane %v937, %v1017
    %v1022 = vmul.f32 %v1000, %v1010
    %v1023 = vmul.f32 %v1001, %v1014
    %v1024 = vmul.f32 %v1002, %v1018
    %v1025 = vmul.f32 %v1003, %v1010
    %v1026 = vmul.f32 %v1004, %v1014
    %v1027 = vmul.f32 %v1005, %v1018
    %v1029 = vlaneseq
    %v1030 = vshrl.u32 %v1029, 7
    %v1031 = vsub.s32 0, %v1030
    %v1032 = vrot.slane %v938, %v1031
    %v1033 = vlaneseq
    %v1034 = vshrl.u32 %v1033, 7
    %v1035 = vsub.s32 1, %v1034
    %v1036 = vrot.slane %v938, %v1035
    %v1037 = vlaneseq
    %v1038 = vshrl.u32 %v1037, 7
    %v1039 = vsub.s32 2, %v1038
    %v1040 = vrot.slane %v938, %v1039
    %v1044 = vadd.f32 %v1022, %v1032
    %v1045 = vadd.f32 %v1023, %v1036
    %v1046 = vadd.f32 %v1024, %v1040
    %v1047 = vadd.f32 %v1025, %v1032
    %v1048 = vadd.f32 %v1026, %v1036
    %v1049 = vadd.f32 %v1027, %v1040
    %v1050 = vmax.f32 %v1044, 0.0
    %v1051 = vmax.f32 %v1045, 0.0
    %v1052 = vmax.f32 %v1046, 0.0
    %v1053 = vmax.f32 %v1047, 0.0
    %v1054 = vmax.f32 %v1048, 0.0
    %v1055 = vmax.f32 %v1049, 0.0
    %v1056 = vpack.c.bf16 %v1053, %v1050
    %v1057 = vpack.c.bf16 %v1054, %v1051
    %v1058 = vpack.c.bf16 %v1055, %v1052
    %v1059 = vld [vmem:[#allocation7] sm:$0xff]
    %v1060 = vld [vmem:[#allocation7 + $0x8] sm:$0xf]
    %v1061 = vld [vmem:[#allocation7 + $0xc] sm:$0xff]
    %v1062 = vld [vmem:[#allocation7 + $0x14] sm:$0xf]
    %v1063 = vld [vmem:[#allocation7 + $0x18] sm:$0xff]
    %v1064 = vld [vmem:[#allocation7 + $0x20] sm:$0xf]
    %v1065 = vld [vmem:[#allocation7 + $0x24] sm:$0xff]
    %v1066 = vld [vmem:[#allocation7 + $0x2c] sm:$0xf]
    %v1067 = vld [vmem:[#allocation7 + $0x30] sm:$0xff]
    %v1068 = vld [vmem:[#allocation7 + $0x38] sm:$0xf]
    %v1069 = vld [vmem:[#allocation7 + $0x3c] sm:$0xff]
    %v1070 = vld [vmem:[#allocation7 + $0x44] sm:$0xf]
    %v1071 = vld [vmem:[#allocation7 + $0x48] sm:$0xff]
    %v1072 = vld [vmem:[#allocation7 + $0x50] sm:$0xf]
    %v1073 = vld [vmem:[#allocation7 + $0x54] sm:$0xff]
    %v1074 = vld [vmem:[#allocation7 + $0x5c] sm:$0xf]
    %v1075 = vld [vmem:[#allocation7 + $0x60] sm:$0xff]
    %v1076 = vld [vmem:[#allocation7 + $0x68] sm:$0xf]
    %v1077 = vld [vmem:[#allocation7 + $0x6c] sm:$0xff]
    %v1078 = vld [vmem:[#allocation7 + $0x74] sm:$0xf]
    %v1079 = vld [vmem:[#allocation7 + $0x78] sm:$0xff]
    %v1080 = vld [vmem:[#allocation7 + $0x80] sm:$0xf]
    %v1081 = vld [vmem:[#allocation7 + $0x84] sm:$0xff]
    %v1082 = vld [vmem:[#allocation7 + $0x8c] sm:$0xf]
    %v1083 = vld [vmem:[#allocation7 + $0x90] sm:$0xff]
    %v1084 = vld [vmem:[#allocation7 + $0x98] sm:$0xf]
    %v1085 = vld [vmem:[#allocation7 + $0x9c] sm:$0xff]
    %v1086 = vld [vmem:[#allocation7 + $0xa4] sm:$0xf]
    %v1087 = vld [vmem:[#allocation7 + $0xa8] sm:$0xff]
    %v1088 = vld [vmem:[#allocation7 + $0xb0] sm:$0xf]
    %v1089 = vld [vmem:[#allocation7 + $0xb4] sm:$0xff]
    %v1090 = vld [vmem:[#allocation7 + $0xbc] sm:$0xf]
    %v1091 = vld [vmem:[#allocation7 + $0xc0] sm:$0xff]
    %v1092 = vld [vmem:[#allocation7 + $0xc8] sm:$0xf]
    %v1093 = vld [vmem:[#allocation7 + $0xcc] sm:$0xff]
    %v1094 = vld [vmem:[#allocation7 + $0xd4] sm:$0xf]
    %v1095 = vld [vmem:[#allocation7 + $0xd8] sm:$0xff]
    %v1096 = vld [vmem:[#allocation7 + $0xe0] sm:$0xf]
    %v1097 = vld [vmem:[#allocation7 + $0xe4] sm:$0xff]
    %v1098 = vld [vmem:[#allocation7 + $0xec] sm:$0xf]
    %v1099 = vld [vmem:[#allocation7 + $0xf0] sm:$0xff]
    %v1100 = vld [vmem:[#allocation7 + $0xf8] sm:$0xf]
    %v1101 = vld [vmem:[#allocation7 + $0xfc] sm:$0xff]
    %v1102 = vld [vmem:[#allocation7 + $0x104] sm:$0xf]
    %v1103 = vld [vmem:[#allocation7 + $0x108] sm:$0xff]
    %v1104 = vld [vmem:[#allocation7 + $0x110] sm:$0xf]
    %v1105 = vld [vmem:[#allocation7 + $0x114] sm:$0xff]
    %v1106 = vld [vmem:[#allocation7 + $0x11c] sm:$0xf]
    %v1107 = vld [vmem:[#allocation7 + $0x120] sm:$0xff]
    %v1108 = vld [vmem:[#allocation7 + $0x128] sm:$0xf]
    %v1109 = vld [vmem:[#allocation7 + $0x12c] sm:$0xff]
    %v1110 = vld [vmem:[#allocation7 + $0x134] sm:$0xf]
    %v1111 = vld [vmem:[#allocation7 + $0x138] sm:$0xff]
    %v1112 = vld [vmem:[#allocation7 + $0x140] sm:$0xf]
    %v1113 = vld [vmem:[#allocation7 + $0x144] sm:$0xff]
    %v1114 = vld [vmem:[#allocation7 + $0x14c] sm:$0xf]
    %v1115 = vld [vmem:[#allocation7 + $0x150] sm:$0xff]
    %v1116 = vld [vmem:[#allocation7 + $0x158] sm:$0xf]
    %v1117 = vld [vmem:[#allocation7 + $0x15c] sm:$0xff]
    %v1118 = vld [vmem:[#allocation7 + $0x164] sm:$0xf]
    %v1119 = vld [vmem:[#allocation7 + $0x168] sm:$0xff]
    %v1120 = vld [vmem:[#allocation7 + $0x170] sm:$0xf]
    %v1121 = vld [vmem:[#allocation7 + $0x174] sm:$0xff]
    %v1122 = vld [vmem:[#allocation7 + $0x17c] sm:$0xf]
    %v1123 = vld [vmem:[#allocation7 + $0x180] sm:$0xff]
    %v1124 = vld [vmem:[#allocation7 + $0x188] sm:$0xf]
    %v1125 = vld [vmem:[#allocation7 + $0x18c] sm:$0xff]
    %v1126 = vld [vmem:[#allocation7 + $0x194] sm:$0xf]
    %v1127 = vld [vmem:[#allocation7 + $0x198] sm:$0xff]
    %v1128 = vld [vmem:[#allocation7 + $0x1a0] sm:$0xf]
    %v1129 = vld [vmem:[#allocation7 + $0x1a4] sm:$0xff]
    %v1130 = vld [vmem:[#allocation7 + $0x1ac] sm:$0xf]
    %v1131 = vld [vmem:[#allocation7 + $0x1b0] sm:$0xff]
    %v1132 = vld [vmem:[#allocation7 + $0x1b8] sm:$0xf]
    %v1133 = vld [vmem:[#allocation7 + $0x1bc] sm:$0xff]
    %v1134 = vld [vmem:[#allocation7 + $0x1c4] sm:$0xf]
    %v1135 = vld [vmem:[#allocation7 + $0x1c8] sm:$0xff]
    %v1136 = vld [vmem:[#allocation7 + $0x1d0] sm:$0xf]
    %v1137 = vld [vmem:[#allocation7 + $0x1d4] sm:$0xff]
    %v1138 = vld [vmem:[#allocation7 + $0x1dc] sm:$0xf]
    %v1139 = vld [vmem:[#allocation7 + $0x1e0] sm:$0xff]
    %v1140 = vld [vmem:[#allocation7 + $0x1e8] sm:$0xf]
    %v1141 = vld [vmem:[#allocation7 + $0x1ec] sm:$0xff]
    %v1142 = vld [vmem:[#allocation7 + $0x1f4] sm:$0xf]
    %v1143 = vld [vmem:[#allocation7 + $0x1f8] sm:$0xff]
    %v1144 = vld [vmem:[#allocation7 + $0x200] sm:$0xf]
    %v1145 = vld [vmem:[#allocation7 + $0x204] sm:$0xff]
    %v1146 = vld [vmem:[#allocation7 + $0x20c] sm:$0xf]
    %v1147 = vld [vmem:[#allocation7 + $0x210] sm:$0xff]
    %v1148 = vld [vmem:[#allocation7 + $0x218] sm:$0xf]
    %v1149 = vld [vmem:[#allocation7 + $0x21c] sm:$0xff]
    %v1150 = vld [vmem:[#allocation7 + $0x224] sm:$0xf]
    %v1151 = vld [vmem:[#allocation7 + $0x228] sm:$0xff]
    %v1152 = vld [vmem:[#allocation7 + $0x230] sm:$0xf]
    %v1153 = vld [vmem:[#allocation7 + $0x234] sm:$0xff]
    %v1154 = vld [vmem:[#allocation7 + $0x23c] sm:$0xf]
    %v1155 = vld [vmem:[%s6] sm:$0x7]
    %v1157 = vlaneseq
    %v1158 = vshrl.u32 %v1157, 7
    %v1159 = vsub.s32 0, %v1158
    %v1160 = vrot.slane %v1155, %v1159
    %v1161 = vlaneseq
    %v1162 = vshrl.u32 %v1161, 7
    %v1163 = vsub.s32 1, %v1162
    %v1164 = vrot.slane %v1155, %v1163
    %v1165 = vlaneseq
    %v1166 = vshrl.u32 %v1165, 7
    %v1167 = vsub.s32 2, %v1166
    %v1168 = vrot.slane %v1155, %v1167
    %v1268 = vunpack.c.l.b16 %v1059
    %v1269 = vunpack.c.h.b16 %v1059
    %v1270 = vunpack.c.l.b16 %v1060
    %v1271 = vunpack.c.l.b16 %v1061
    %v1272 = vunpack.c.h.b16 %v1061
    %v1273 = vunpack.c.l.b16 %v1062
    %v1274 = vunpack.c.l.b16 %v1063
    %v1275 = vunpack.c.h.b16 %v1063
    %v1276 = vunpack.c.l.b16 %v1064
    %v1277 = vunpack.c.l.b16 %v1065
    %v1278 = vunpack.c.h.b16 %v1065
    %v1279 = vunpack.c.l.b16 %v1066
    %v1280 = vunpack.c.l.b16 %v1067
    %v1281 = vunpack.c.h.b16 %v1067
    %v1282 = vunpack.c.l.b16 %v1068
    %v1283 = vunpack.c.l.b16 %v1069
    %v1284 = vunpack.c.h.b16 %v1069
    %v1285 = vunpack.c.l.b16 %v1070
    %v1286 = vunpack.c.l.b16 %v1071
    %v1287 = vunpack.c.h.b16 %v1071
    %v1288 = vunpack.c.l.b16 %v1072
    %v1289 = vunpack.c.l.b16 %v1073
    %v1290 = vunpack.c.h.b16 %v1073
    %v1291 = vunpack.c.l.b16 %v1074
    %v1292 = vunpack.c.l.b16 %v1075
    %v1293 = vunpack.c.h.b16 %v1075
    %v1294 = vunpack.c.l.b16 %v1076
    %v1295 = vunpack.c.l.b16 %v1077
    %v1296 = vunpack.c.h.b16 %v1077
    %v1297 = vunpack.c.l.b16 %v1078
    %v1298 = vunpack.c.l.b16 %v1079
    %v1299 = vunpack.c.h.b16 %v1079
    %v1300 = vunpack.c.l.b16 %v1080
    %v1301 = vunpack.c.l.b16 %v1081
    %v1302 = vunpack.c.h.b16 %v1081
    %v1303 = vunpack.c.l.b16 %v1082
    %v1304 = vunpack.c.l.b16 %v1083
    %v1305 = vunpack.c.h.b16 %v1083
    %v1306 = vunpack.c.l.b16 %v1084
    %v1307 = vunpack.c.l.b16 %v1085
    %v1308 = vunpack.c.h.b16 %v1085
    %v1309 = vunpack.c.l.b16 %v1086
    %v1310 = vunpack.c.l.b16 %v1087
    %v1311 = vunpack.c.h.b16 %v1087
    %v1312 = vunpack.c.l.b16 %v1088
    %v1313 = vunpack.c.l.b16 %v1089
    %v1314 = vunpack.c.h.b16 %v1089
    %v1315 = vunpack.c.l.b16 %v1090
    %v1316 = vunpack.c.l.b16 %v1091
    %v1317 = vunpack.c.h.b16 %v1091
    %v1318 = vunpack.c.l.b16 %v1092
    %v1319 = vunpack.c.l.b16 %v1093
    %v1320 = vunpack.c.h.b16 %v1093
    %v1321 = vunpack.c.l.b16 %v1094
    %v1322 = vunpack.c.l.b16 %v1095
    %v1323 = vunpack.c.h.b16 %v1095
    %v1324 = vunpack.c.l.b16 %v1096
    %v1325 = vunpack.c.l.b16 %v1097
    %v1326 = vunpack.c.h.b16 %v1097
    %v1327 = vunpack.c.l.b16 %v1098
    %v1328 = vunpack.c.l.b16 %v1099
    %v1329 = vunpack.c.h.b16 %v1099
    %v1330 = vunpack.c.l.b16 %v1100
    %v1331 = vunpack.c.l.b16 %v1101
    %v1332 = vunpack.c.h.b16 %v1101
    %v1333 = vunpack.c.l.b16 %v1102
    %v1334 = vunpack.c.l.b16 %v1103
    %v1335 = vunpack.c.h.b16 %v1103
    %v1336 = vunpack.c.l.b16 %v1104
    %v1337 = vunpack.c.l.b16 %v1105
    %v1338 = vunpack.c.h.b16 %v1105
    %v1339 = vunpack.c.l.b16 %v1106
    %v1340 = vunpack.c.l.b16 %v1107
    %v1341 = vunpack.c.h.b16 %v1107
    %v1342 = vunpack.c.l.b16 %v1108
    %v1343 = vunpack.c.l.b16 %v1109
    %v1344 = vunpack.c.h.b16 %v1109
    %v1345 = vunpack.c.l.b16 %v1110
    %v1346 = vunpack.c.l.b16 %v1111
    %v1347 = vunpack.c.h.b16 %v1111
    %v1348 = vunpack.c.l.b16 %v1112
    %v1349 = vunpack.c.l.b16 %v1113
    %v1350 = vunpack.c.h.b16 %v1113
    %v1351 = vunpack.c.l.b16 %v1114
    %v1352 = vunpack.c.l.b16 %v1115
    %v1353 = vunpack.c.h.b16 %v1115
    %v1354 = vunpack.c.l.b16 %v1116
    %v1355 = vunpack.c.l.b16 %v1117
    %v1356 = vunpack.c.h.b16 %v1117
    %v1357 = vunpack.c.l.b16 %v1118
    %v1358 = vunpack.c.l.b16 %v1119
    %v1359 = vunpack.c.h.b16 %v1119
    %v1360 = vunpack.c.l.b16 %v1120
    %v1361 = vunpack.c.l.b16 %v1121
    %v1362 = vunpack.c.h.b16 %v1121
    %v1363 = vunpack.c.l.b16 %v1122
    %v1364 = vunpack.c.l.b16 %v1123
    %v1365 = vunpack.c.h.b16 %v1123
    %v1366 = vunpack.c.l.b16 %v1124
    %v1367 = vunpack.c.l.b16 %v1125
    %v1368 = vunpack.c.h.b16 %v1125
    %v1369 = vunpack.c.l.b16 %v1126
    %v1370 = vunpack.c.l.b16 %v1127
    %v1371 = vunpack.c.h.b16 %v1127
    %v1372 = vunpack.c.l.b16 %v1128
    %v1373 = vunpack.c.l.b16 %v1129
    %v1374 = vunpack.c.h.b16 %v1129
    %v1375 = vunpack.c.l.b16 %v1130
    %v1376 = vunpack.c.l.b16 %v1131
    %v1377 = vunpack.c.h.b16 %v1131
    %v1378 = vunpack.c.l.b16 %v1132
    %v1379 = vunpack.c.l.b16 %v1133
    %v1380 = vunpack.c.h.b16 %v1133
    %v1381 = vunpack.c.l.b16 %v1134
    %v1382 = vunpack.c.l.b16 %v1135
    %v1383 = vunpack.c.h.b16 %v1135
    %v1384 = vunpack.c.l.b16 %v1136
    %v1385 = vunpack.c.l.b16 %v1137
    %v1386 = vunpack.c.h.b16 %v1137
    %v1387 = vunpack.c.l.b16 %v1138
    %v1388 = vunpack.c.l.b16 %v1139
    %v1389 = vunpack.c.h.b16 %v1139
    %v1390 = vunpack.c.l.b16 %v1140
    %v1391 = vunpack.c.l.b16 %v1141
    %v1392 = vunpack.c.h.b16 %v1141
    %v1393 = vunpack.c.l.b16 %v1142
    %v1394 = vunpack.c.l.b16 %v1143
    %v1395 = vunpack.c.h.b16 %v1143
    %v1396 = vunpack.c.l.b16 %v1144
    %v1397 = vunpack.c.l.b16 %v1145
    %v1398 = vunpack.c.h.b16 %v1145
    %v1399 = vunpack.c.l.b16 %v1146
    %v1400 = vunpack.c.l.b16 %v1147
    %v1401 = vunpack.c.h.b16 %v1147
    %v1402 = vunpack.c.l.b16 %v1148
    %v1403 = vunpack.c.l.b16 %v1149
    %v1404 = vunpack.c.h.b16 %v1149
    %v1405 = vunpack.c.l.b16 %v1150
    %v1406 = vunpack.c.l.b16 %v1151
    %v1407 = vunpack.c.h.b16 %v1151
    %v1408 = vunpack.c.l.b16 %v1152
    %v1409 = vunpack.c.l.b16 %v1153
    %v1410 = vunpack.c.h.b16 %v1153
    %v1411 = vunpack.c.l.b16 %v1154
    %v1412 = vpack.c.b16 %v1271, %v1268
    %v1413 = vpack.c.b16 %v1272, %v1269
    %v1414 = vpack.c.b16 %v1273, %v1270
    %v1415 = vpack.c.b16 %v1277, %v1274
    %v1416 = vpack.c.b16 %v1278, %v1275
    %v1417 = vpack.c.b16 %v1279, %v1276
    %v1418 = vpack.c.b16 %v1283, %v1280
    %v1419 = vpack.c.b16 %v1284, %v1281
    %v1420 = vpack.c.b16 %v1285, %v1282
    %v1421 = vpack.c.b16 %v1289, %v1286
    %v1422 = vpack.c.b16 %v1290, %v1287
    %v1423 = vpack.c.b16 %v1291, %v1288
    %v1424 = vpack.c.b16 %v1295, %v1292
    %v1425 = vpack.c.b16 %v1296, %v1293
    %v1426 = vpack.c.b16 %v1297, %v1294
    %v1427 = vpack.c.b16 %v1301, %v1298
    %v1428 = vpack.c.b16 %v1302, %v1299
    %v1429 = vpack.c.b16 %v1303, %v1300
    %v1430 = vpack.c.b16 %v1307, %v1304
    %v1431 = vpack.c.b16 %v1308, %v1305
    %v1432 = vpack.c.b16 %v1309, %v1306
    %v1433 = vpack.c.b16 %v1313, %v1310
    %v1434 = vpack.c.b16 %v1314, %v1311
    %v1435 = vpack.c.b16 %v1315, %v1312
    %v1436 = vpack.c.b16 %v1319, %v1316
    %v1437 = vpack.c.b16 %v1320, %v1317
    %v1438 = vpack.c.b16 %v1321, %v1318
    %v1439 = vpack.c.b16 %v1325, %v1322
    %v1440 = vpack.c.b16 %v1326, %v1323
    %v1441 = vpack.c.b16 %v1327, %v1324
    %v1442 = vpack.c.b16 %v1331, %v1328
    %v1443 = vpack.c.b16 %v1332, %v1329
    %v1444 = vpack.c.b16 %v1333, %v1330
    %v1445 = vpack.c.b16 %v1337, %v1334
    %v1446 = vpack.c.b16 %v1338, %v1335
    %v1447 = vpack.c.b16 %v1339, %v1336
    %v1448 = vpack.c.b16 %v1343, %v1340
    %v1449 = vpack.c.b16 %v1344, %v1341
    %v1450 = vpack.c.b16 %v1345, %v1342
    %v1451 = vpack.c.b16 %v1349, %v1346
    %v1452 = vpack.c.b16 %v1350, %v1347
    %v1453 = vpack.c.b16 %v1351, %v1348
    %v1454 = vpack.c.b16 %v1355, %v1352
    %v1455 = vpack.c.b16 %v1356, %v1353
    %v1456 = vpack.c.b16 %v1357, %v1354
    %v1457 = vpack.c.b16 %v1361, %v1358
    %v1458 = vpack.c.b16 %v1362, %v1359
    %v1459 = vpack.c.b16 %v1363, %v1360
    %v1460 = vpack.c.b16 %v1367, %v1364
    %v1461 = vpack.c.b16 %v1368, %v1365
    %v1462 = vpack.c.b16 %v1369, %v1366
    %v1463 = vpack.c.b16 %v1373, %v1370
    %v1464 = vpack.c.b16 %v1374, %v1371
    %v1465 = vpack.c.b16 %v1375, %v1372
    %v1466 = vpack.c.b16 %v1379, %v1376
    %v1467 = vpack.c.b16 %v1380, %v1377
    %v1468 = vpack.c.b16 %v1381, %v1378
    %v1469 = vpack.c.b16 %v1385, %v1382
    %v1470 = vpack.c.b16 %v1386, %v1383
    %v1471 = vpack.c.b16 %v1387, %v1384
    %v1472 = vpack.c.b16 %v1391, %v1388
    %v1473 = vpack.c.b16 %v1392, %v1389
    %v1474 = vpack.c.b16 %v1393, %v1390
    %v1475 = vpack.c.b16 %v1397, %v1394
    %v1476 = vpack.c.b16 %v1398, %v1395
    %v1477 = vpack.c.b16 %v1399, %v1396
    %v1478 = vpack.c.b16 %v1403, %v1400
    %v1479 = vpack.c.b16 %v1404, %v1401
    %v1480 = vpack.c.b16 %v1405, %v1402
    %v1481 = vpack.c.b16 %v1409, %v1406
    %v1482 = vpack.c.b16 %v1410, %v1407
    %v1483 = vpack.c.b16 %v1411, %v1408
    %1556 = vmatprep.subr.bf16.mxu0 %v1434
    %1557 = vmatpush1.bf16.msra.mxu0 %v1433
    %1558 = vmatprep.subr.bf16.mxu0 %v1431
    %1559 = vmatpush1.bf16.msra.mxu0 %v1430
    %1560 = vmatprep.subr.bf16.mxu0 %v1428
    %1561 = vmatpush1.bf16.msra.mxu0 %v1427
    %1562 = vmatprep.subr.bf16.mxu0 %v1425
    %1563 = vmatpush1.bf16.msra.mxu0 %v1424
    %1564 = vmatprep.subr.bf16.mxu0 %v1422
    %1565 = vmatpush1.bf16.msra.mxu0 %v1421
    %1566 = vmatprep.subr.bf16.mxu0 %v1419
    %1567 = vmatpush1.bf16.msra.mxu0 %v1418
    %1568 = vmatprep.subr.bf16.mxu0 %v1416
    %1569 = vmatpush1.bf16.msra.mxu0 %v1415
    %1570 = vmatprep.subr.bf16.mxu0 %v1413
    %1571 = vmatpush1.bf16.msra.mxu0 %v1412
    %1572 = vmatprep.subr.bf16.mxu0 %v1458
    %1573 = vmatpush2.bf16.msra.mxu0 %v1457
    %1574 = vmatprep.subr.bf16.mxu0 %v1455
    %1575 = vmatpush2.bf16.msra.mxu0 %v1454
    %1576 = vmatprep.subr.bf16.mxu0 %v1452
    %1577 = vmatpush2.bf16.msra.mxu0 %v1451
    %1578 = vmatprep.subr.bf16.mxu0 %v1449
    %1579 = vmatpush2.bf16.msra.mxu0 %v1448
    %1580 = vmatprep.subr.bf16.mxu0 %v1446
    %1581 = vmatpush2.bf16.msra.mxu0 %v1445
    %1582 = vmatprep.subr.bf16.mxu0 %v1443
    %1583 = vmatpush2.bf16.msra.mxu0 %v1442
    %1584 = vmatprep.subr.bf16.mxu0 %v1440
    %1585 = vmatpush2.bf16.msra.mxu0 %v1439
    %1586 = vmatprep.subr.bf16.mxu0 %v1437
    %1587 = vmatpush2.bf16.msra.mxu0 %v1436
    %1588 = vmatprep.mubr.bf16.mxu0 %v1057
    %1589 = vmatmul.mubr.bf16.gmra.mxu0 %v1056
    %v1590 = vpop.f32.mrf.mxu0
    %v1591 = vadd.f32 %v1160, %v1590
    %v1592 = vpop.f32.mrf.mxu0
    %v1593 = vadd.f32 %v1164, %v1592
    %v1594 = vpop.f32.mrf.mxu0
    %v1595 = vadd.f32 %v1160, %v1594
    %v1596 = vpop.f32.mrf.mxu0
    %v1597 = vadd.f32 %v1164, %v1596
    %1598 = vdwg.mxu0
    %1599 = vmatprep.subr.bf16.mxu0 %v1482
    %1600 = vmatpush1.bf16.msra.mxu0 %v1481
    %1601 = vmatprep.subr.bf16.mxu0 %v1479
    %1602 = vmatpush1.bf16.msra.mxu0 %v1478
    %1603 = vmatprep.subr.bf16.mxu0 %v1476
    %1604 = vmatpush1.bf16.msra.mxu0 %v1475
    %1605 = vmatprep.subr.bf16.mxu0 %v1473
    %1606 = vmatpush1.bf16.msra.mxu0 %v1472
    %1607 = vmatprep.subr.bf16.mxu0 %v1470
    %1608 = vmatpush1.bf16.msra.mxu0 %v1469
    %1609 = vmatprep.subr.bf16.mxu0 %v1467
    %1610 = vmatpush1.bf16.msra.mxu0 %v1466
    %1611 = vmatprep.subr.bf16.mxu0 %v1464
    %1612 = vmatpush1.bf16.msra.mxu0 %v1463
    %1613 = vmatprep.subr.bf16.mxu0 %v1461
    %1614 = vmatpush1.bf16.msra.mxu0 %v1460
    %1615 = vmatprep.subr.bf16.mxu0 0
    %1616 = vmatpush2.bf16.msra.mxu0 0
    %1617 = vmatprep.subr.bf16.mxu0 0
    %1618 = vmatpush2.bf16.msra.mxu0 0
    %1619 = vmatprep.subr.bf16.mxu0 0
    %1620 = vmatpush2.bf16.msra.mxu0 0
    %1621 = vmatprep.subr.bf16.mxu0 0
    %1622 = vmatpush2.bf16.msra.mxu0 0
    %1623 = vmatprep.subr.bf16.mxu0 0
    %1624 = vmatpush2.bf16.msra.mxu0 0
    %1625 = vmatprep.subr.bf16.mxu0 0
    %1626 = vmatpush2.bf16.msra.mxu0 0
    %1627 = vmatprep.subr.bf16.mxu0 0
    %1628 = vmatpush2.bf16.msra.mxu0 0
    %1629 = vmatprep.subr.bf16.mxu0 0
    %1630 = vmatpush2.bf16.msra.mxu0 0
    %1631 = vmatprep.mubr.bf16.mxu0 0
    %1632 = vmatmul.mubr.bf16.gmra.mxu0 %v1058
    %v1633 = vpop.f32.mrf.mxu0
    %v1634 = vadd.f32 %v1591, %v1633
    %v1635 = vpop.f32.mrf.mxu0
    %v1636 = vadd.f32 %v1593, %v1635
    %v1637 = vpop.f32.mrf.mxu0
    %v1638 = vadd.f32 %v1595, %v1637
    %v1639 = vpop.f32.mrf.mxu0
    %v1640 = vadd.f32 %v1597, %v1639
    %1641 = vdwg.mxu0
    %1642 = vmatprep.subr.bf16.mxu0 0
    %1643 = vmatpush1.bf16.msra.mxu0 %v1435
    %1644 = vmatprep.subr.bf16.mxu0 0
    %1645 = vmatpush1.bf16.msra.mxu0 %v1432
    %1646 = vmatprep.subr.bf16.mxu0 0
    %1647 = vmatpush1.bf16.msra.mxu0 %v1429
    %1648 = vmatprep.subr.bf16.mxu0 0
    %1649 = vmatpush1.bf16.msra.mxu0 %v1426
    %1650 = vmatprep.subr.bf16.mxu0 0
    %1651 = vmatpush1.bf16.msra.mxu0 %v1423
    %1652 = vmatprep.subr.bf16.mxu0 0
    %1653 = vmatpush1.bf16.msra.mxu0 %v1420
    %1654 = vmatprep.subr.bf16.mxu0 0
    %1655 = vmatpush1.bf16.msra.mxu0 %v1417
    %1656 = vmatprep.subr.bf16.mxu0 0
    %1657 = vmatpush1.bf16.msra.mxu0 %v1414
    %1658 = vmatprep.subr.bf16.mxu0 0
    %1659 = vmatpush2.bf16.msra.mxu0 %v1459
    %1660 = vmatprep.subr.bf16.mxu0 0
    %1661 = vmatpush2.bf16.msra.mxu0 %v1456
    %1662 = vmatprep.subr.bf16.mxu0 0
    %1663 = vmatpush2.bf16.msra.mxu0 %v1453
    %1664 = vmatprep.subr.bf16.mxu0 0
    %1665 = vmatpush2.bf16.msra.mxu0 %v1450
    %1666 = vmatprep.subr.bf16.mxu0 0
    %1667 = vmatpush2.bf16.msra.mxu0 %v1447
    %1668 = vmatprep.subr.bf16.mxu0 0
    %1669 = vmatpush2.bf16.msra.mxu0 %v1444
    %1670 = vmatprep.subr.bf16.mxu0 0
    %1671 = vmatpush2.bf16.msra.mxu0 %v1441
    %1672 = vmatprep.subr.bf16.mxu0 0
    %1673 = vmatpush2.bf16.msra.mxu0 %v1438
    %1674 = vmatprep.mubr.bf16.mxu0 %v1057
    %1675 = vmatmul.mubr.bf16.gmra.mxu0 %v1056
    %v1676 = vpop.f32.mrf.mxu0
    %v1677 = vadd.f32 %v1168, %v1676
    %v1678 = vpop.f32.mrf.mxu0
    %v1679 = vpop.f32.mrf.mxu0
    %v1680 = vadd.f32 %v1168, %v1679
    %v1681 = vpop.f32.mrf.mxu0
    %1682 = vdwg.mxu0
    %1683 = vmatprep.subr.bf16.mxu0 0
    %1684 = vmatpush1.bf16.msra.mxu0 %v1483
    %1685 = vmatprep.subr.bf16.mxu0 0
    %1686 = vmatpush1.bf16.msra.mxu0 %v1480
    %1687 = vmatprep.subr.bf16.mxu0 0
    %1688 = vmatpush1.bf16.msra.mxu0 %v1477
    %1689 = vmatprep.subr.bf16.mxu0 0
    %1690 = vmatpush1.bf16.msra.mxu0 %v1474
    %1691 = vmatprep.subr.bf16.mxu0 0
    %1692 = vmatpush1.bf16.msra.mxu0 %v1471
    %1693 = vmatprep.subr.bf16.mxu0 0
    %1694 = vmatpush1.bf16.msra.mxu0 %v1468
    %1695 = vmatprep.subr.bf16.mxu0 0
    %1696 = vmatpush1.bf16.msra.mxu0 %v1465
    %1697 = vmatprep.subr.bf16.mxu0 0
    %1698 = vmatpush1.bf16.msra.mxu0 %v1462
    %1699 = vmatprep.subr.bf16.mxu0 0
    %1700 = vmatpush2.bf16.msra.mxu0 0
    %1701 = vmatprep.subr.bf16.mxu0 0
    %1702 = vmatpush2.bf16.msra.mxu0 0
    %1703 = vmatprep.subr.bf16.mxu0 0
    %1704 = vmatpush2.bf16.msra.mxu0 0
    %1705 = vmatprep.subr.bf16.mxu0 0
    %1706 = vmatpush2.bf16.msra.mxu0 0
    %1707 = vmatprep.subr.bf16.mxu0 0
    %1708 = vmatpush2.bf16.msra.mxu0 0
    %1709 = vmatprep.subr.bf16.mxu0 0
    %1710 = vmatpush2.bf16.msra.mxu0 0
    %1711 = vmatprep.subr.bf16.mxu0 0
    %1712 = vmatpush2.bf16.msra.mxu0 0
    %1713 = vmatprep.subr.bf16.mxu0 0
    %1714 = vmatpush2.bf16.msra.mxu0 0
    %1715 = vmatprep.mubr.bf16.mxu0 0
    %1716 = vmatmul.mubr.bf16.gmra.mxu0 %v1058
    %v1717 = vpop.f32.mrf.mxu0
    %v1718 = vadd.f32 %v1677, %v1717
    %v1719 = vpop.f32.mrf.mxu0
    %v1720 = vpop.f32.mrf.mxu0
    %v1721 = vadd.f32 %v1680, %v1720
    %v1722 = vpop.f32.mrf.mxu0
    %1723 = vdwg.mxu0
    %v1724 = vmul.f32 %v1634, %v949
    %v1725 = vmul.f32 %v1636, %v950
    %v1726 = vmul.f32 %v1718, %v951
    %v1727 = vmul.f32 %v1638, %v949
    %v1728 = vmul.f32 %v1640, %v950
    %v1729 = vmul.f32 %v1721, %v951
    %v1730 = vadd.f32 %v1724, %v1725
    %v1731 = vadd.f32 %v1730, %v1726
    %1732 = vadd.xlane.f32.xlu0 %v1731
    %v1733 = vpop.xlane.xlu0 %1732
    %v1734 = vadd.f32 %v1727, %v1728
    %v1735 = vadd.f32 %v1734, %v1729
    %1736 = vadd.xlane.f32.xlu0 %v1735
    %v1737 = vpop.xlane.xlu0 %1736
    %v1738 = vmul.f32 %v1733, 0.0033333334
    %v1739 = vmul.f32 %v1737, 0.0033333334
    %v1740 = vsub.f32 %v1724, %v1738
    %v1741 = vsub.f32 %v1725, %v1738
    %v1742 = vsub.f32 %v1726, %v1738
    %v1743 = vsub.f32 %v1727, %v1739
    %v1744 = vsub.f32 %v1728, %v1739
    %v1745 = vsub.f32 %v1729, %v1739
    %v1746 = vmul.f32 %v1740, %v949
    %v1747 = vmul.f32 %v1741, %v950
    %v1748 = vmul.f32 %v1742, %v951
    %v1749 = vmul.f32 %v1743, %v949
    %v1750 = vmul.f32 %v1744, %v950
    %v1751 = vmul.f32 %v1745, %v951
    %v1752 = vmul.f32 %v1746, %v1746
    %v1753 = vmul.f32 %v1747, %v1747
    %v1754 = vmul.f32 %v1748, %v1748
    %v1755 = vmul.f32 %v1749, %v1749
    %v1756 = vmul.f32 %v1750, %v1750
    %v1757 = vmul.f32 %v1751, %v1751
    %v1758 = vadd.f32 %v1752, %v1753
    %v1759 = vadd.f32 %v1758, %v1754
    %1760 = vadd.xlane.f32.xlu0 %v1759
    %v1761 = vpop.xlane.xlu0 %1760
    %v1762 = vadd.f32 %v1755, %v1756
    %v1763 = vadd.f32 %v1762, %v1757
    %1764 = vadd.xlane.f32.xlu0 %v1763
    %v1765 = vpop.xlane.xlu0 %1764
    %v1766 = vmul.f32 %v1761, 0.0033333334
    %v1767 = vmul.f32 %v1765, 0.0033333334
    %v1768 = vadd.f32 %v1766, 1e-05
    %v1769 = vadd.f32 %v1767, 1e-05
    %v1770 = vrsqrt.pop %v1768
    %v1771 = vrsqrt.pop %v1769
    %v1772 = vmul.f32 %v1746, %v1770
    %v1773 = vmul.f32 %v1747, %v1770
    %v1774 = vmul.f32 %v1748, %v1770
    %v1775 = vmul.f32 %v1749, %v1771
    %v1776 = vmul.f32 %v1750, %v1771
    %v1777 = vmul.f32 %v1751, %v1771
    %v1778 = vmul.f32 %v1772, %v1010
    %v1779 = vmul.f32 %v1773, %v1014
    %v1780 = vmul.f32 %v1774, %v1018
    %v1781 = vmul.f32 %v1775, %v1010
    %v1782 = vmul.f32 %v1776, %v1014
    %v1783 = vmul.f32 %v1777, %v1018
    %v1784 = vadd.f32 %v1778, %v1032
    %v1785 = vadd.f32 %v1779, %v1036
    %v1786 = vadd.f32 %v1780, %v1040
    %v1787 = vadd.f32 %v1781, %v1032
    %v1788 = vadd.f32 %v1782, %v1036
    %v1789 = vadd.f32 %v1783, %v1040
    %v1790 = vmax.f32 %v1784, 0.0
    %v1791 = vmax.f32 %v1785, 0.0
    %v1792 = vmax.f32 %v1786, 0.0
    %v1793 = vmax.f32 %v1787, 0.0
    %v1794 = vmax.f32 %v1788, 0.0
    %v1795 = vmax.f32 %v1789, 0.0
    %v1796 = vld [vmem:[#allocation8] sm:$0x7]
    %v1798 = vlaneseq
    %v1799 = vshrl.u32 %v1798, 7
    %v1800 = vsub.s32 0, %v1799
    %v1801 = vrot.slane %v1796, %v1800
    %v1802 = vlaneseq
    %v1803 = vshrl.u32 %v1802, 7
    %v1804 = vsub.s32 1, %v1803
    %v1805 = vrot.slane %v1796, %v1804
    %v1806 = vlaneseq
    %v1807 = vshrl.u32 %v1806, 7
    %v1808 = vsub.s32 2, %v1807
    %v1809 = vrot.slane %v1796, %v1808
    %v1813 = vmul.f32 %v1790, %v1801
    %v1814 = vmul.f32 %v1791, %v1805
    %v1815 = vmul.f32 %v1792, %v1809
    %v1816 = vmul.f32 %v1793, %v1801
    %v1817 = vmul.f32 %v1794, %v1805
    %v1818 = vmul.f32 %v1795, %v1809
    %v1819 = vadd.f32 %v1813, %v1814
    %v1820 = vadd.f32 %v1819, %v1815
    %1821 = vadd.xlane.f32.xlu0 %v1820
    %v1822 = vpop.xlane.xlu0 %1821
    %v1823 = vadd.f32 %v1816, %v1817
    %v1824 = vadd.f32 %v1823, %v1818
    %1825 = vadd.xlane.f32.xlu0 %v1824
    %v1826 = vpop.xlane.xlu0 %1825
    %v1827 = vld [vmem:[#allocation2] sm:$0x1]
    %v1829 = vlaneseq
    %v1830 = vshrl.u32 %v1829, 7
    %v1831 = vsub.s32 0, %v1830
    %v1832 = vrot.slane %v1827, %v1831
    %v1834 = vadd.f32 %v1822, %v1832
    %v1835 = vadd.f32 %v1826, %v1832
    %v1836 = vtanh.pop %v1834
    %v1837 = vtanh.pop %v1835
    %vm1838 = vcmask 7168
    %1839 = vst.msk [vmem:[%s9] sm:$0xff] %vm1838, %v1836
    %1840 = vst.msk [vmem:[%s9 + $0x8] sm:$0xff] %vm1838, %v1837
    // Predicated region
    $region54: #{tpu_custom_call.1} parent=1 // pred_check
      _
    $region55: #{tpu_custom_call.1} parent=1 // pred_check_branch
      %1842 = sbr.rel (0) target = $region57
    $region56: #{tpu_custom_call.1} parent=1 // pred_region
      _
    $region57: #{tpu_custom_call.1} parent=1 // pred_fallthru
      _
    // Predicated region
    $region58: #{tpu_custom_call.1} parent=1 // pred_check
      _
    $region59: #{tpu_custom_call.1} parent=1 // pred_check_branch
      %1844 = sbr.rel (0) target = $region61
    $region60: #{tpu_custom_call.1} parent=1 // pred_region
      _
    $region61: #{tpu_custom_call.1} parent=1 // pred_fallthru
      _
    %1845 = vsyncpa [#allocation4], 1
    %1846 = vsyncpa [#allocation6], 1
    %1847 = vsyncpa [#allocation9], 1

</llo_original>
